<compile_context>
chip_gen: v7x
topology: tpu7x:2x2x1
jax: 0.10.0
libtpu: 0.0.40
codegen_flags: <defaults>
</compile_context>

<pallas_src>
import jax
import jax.numpy as jnp
from jax.experimental import pallas as pl
from jax.experimental.pallas import tpu as pltpu

IN_FEATURES = 784
OUT_FEATURES = 10
OUT_PAD = 128      # lane-dense compute width for the logits / softmax
NEG_BIG = -1e30    # "minus infinity" bias for padded logit lanes (finite -> no NaN)


def net_kernel(x_ref, w_ref, b_ref, o_ref):
    # x_ref: (TB, 784)  w_ref: (784, 128)  b_ref: (1, 128)  o_ref: (TB, 10)
    x = x_ref[...]
    w = w_ref[...]
    b = b_ref[...]

    # Linear layer on the MXU, f32 accumulate.  Padded weight columns are zero
    # and padded bias lanes are NEG_BIG, so lanes 10..127 carry ~-1e30 and
    # vanish under exp().  HIGHEST precision: kernel is not MXU-bound.
    logits = jnp.dot(x, w,
                     preferred_element_type=jnp.float32,
                     precision=jax.lax.Precision.HIGHEST) + b

    # Numerically-stable softmax along the last axis (== PyTorch dim=1).
    m = jnp.max(logits, axis=-1, keepdims=True)
    e = jnp.exp(logits - m)                      # pad lanes -> exp(-huge) = 0
    denom = jnp.sum(e, axis=-1, keepdims=True)   # == sum over the 10 real lanes
    probs = e / denom                            # exact divide (VPU slack)

    # Store only the 10 real class lanes; masked vst is hidden under x DMA.
    o_ref[...] = probs[:, :OUT_FEATURES].astype(o_ref.dtype)


def prepare_params(w, b):
    """Build the lane-dense, resident-in-VMEM parameter layout once.

    w: (784, 10) (== torch W.T), b: (10,) -> w_pad (784, 128), b_pad (1, 128).
    """
    w_pad = (jnp.zeros((IN_FEATURES, OUT_PAD), jnp.float32)
             .at[:, :OUT_FEATURES].set(w.astype(jnp.float32)))
    b_pad = (jnp.full((1, OUT_PAD), NEG_BIG, jnp.float32)
             .at[0, :OUT_FEATURES].set(b.astype(jnp.float32)))
    return w_pad, b_pad


def net_forward(x, w_pad, b_pad, *, tb=2048):
    """x: (B, 1, 28, 28) (or anything reshapeable to (B, 784)) -> (B, 10)."""
    B = x.shape[0]
    x_flat = x.reshape(B, IN_FEATURES).astype(jnp.float32)  # view-only for f32 input

    # Batch-tile selection:
    #   * tiny batches: one block whose sublane dim equals the full batch dim
    #     (satisfies the (8,128) rule without any row padding),
    #   * otherwise: multiple-of-8 tiles, >= 2 blocks so the "parallel" grid
    #     axis lands on both TensorCores on v7x; the ragged tail block is
    #     masked by Pallas (no jnp.pad pass over x).
    if B <= 16:
        tb_eff = B
    elif B <= tb:
        tb_eff = (((B + 1) // 2) + 7) // 8 * 8   # split batch into 2 tiles
    else:
        tb_eff = max(8, (tb // 8) * 8)
    n_blocks = pl.cdiv(B, tb_eff)

    out = pl.pallas_call(
        net_kernel,
        out_shape=jax.ShapeDtypeStruct((B, OUT_FEATURES), jnp.float32),
        grid=(n_blocks,),
        in_specs=[
            pl.BlockSpec((tb_eff, IN_FEATURES), lambda i: (i, 0)),   # streamed x tiles
            pl.BlockSpec((IN_FEATURES, OUT_PAD), lambda i: (0, 0)),  # resident W
            pl.BlockSpec((1, OUT_PAD), lambda i: (0, 0)),            # resident b
        ],
        out_specs=pl.BlockSpec((tb_eff, OUT_FEATURES), lambda i: (i, 0)),
        compiler_params=pltpu.CompilerParams(
            dimension_semantics=("parallel",),      # megacore-split the batch grid
            vmem_limit_bytes=40 * 1024 * 1024,      # safe on v5e/v6e/v7x at tb=2048
        ),
    )(x_flat, w_pad, b_pad)

    return out


if __name__ == "__main__":
    key = jax.random.PRNGKey(0)
    kx, kw, kb = jax.random.split(key, 3)

    # Deterministic synthetic parameters (nn.Linear(784, 10) shapes),
    # stored transposed relative to torch: (in_features, out_features).
    bound = 1.0 / (IN_FEATURES ** 0.5)
    w = jax.random.uniform(kw, (IN_FEATURES, OUT_FEATURES),
                           minval=-bound, maxval=bound, dtype=jnp.float32)
    b = jax.random.uniform(kb, (OUT_FEATURES,),
                           minval=-bound, maxval=bound, dtype=jnp.float32)

    # Small MNIST-like batch: (B, C, H, W) = (2, 1, 28, 28).
    x = jax.random.normal(kx, (2, 1, 28, 28), dtype=jnp.float32)

    w_pad, b_pad = prepare_params(w, b)          # built once, reused every call
    out = net_forward(x, w_pad, b_pad)
    out = jax.block_until_ready(out)

    # Reference: plain-JAX forward at matching (HIGHEST) matmul precision.
    logits_ref = jnp.dot(x.reshape(-1, IN_FEATURES), w,
                         precision=jax.lax.Precision.HIGHEST) + b
    ref = jax.nn.softmax(logits_ref, axis=1)

    assert out.shape == (2, OUT_FEATURES)
    assert jnp.allclose(out, ref, atol=1e-4, rtol=1e-4)
    assert jnp.allclose(jnp.sum(out, axis=1), 1.0, atol=1e-4)

    print("KERNEL_OK")
</pallas_src>

<mosaic_0001>
module attributes {stable_mosaic.version = 11 : i64} {
  func.func @net_kernel(%arg0: i32, %arg1: memref<2x784xf32, #tpu.memory_space<vmem>>, %arg2: memref<784x128xf32, #tpu.memory_space<vmem>>, %arg3: memref<1x128xf32, #tpu.memory_space<vmem>>, %arg4: memref<2x10xf32, #tpu.memory_space<vmem>>) attributes {dimension_semantics = [#tpu.dimension_semantics<parallel>], iteration_bounds = array<i64: 1>, scalar_prefetch = 0 : i64, scratch_operands = 0 : i64, tpu.core_type = #tpu.core_type<tc>, window_params = [{transform_indices = @transform_0, window_bounds = array<i64: 2, 784>}, {pipeline_mode = #tpu.pipeline_mode<synchronous>, transform_indices = @transform_1, window_bounds = array<i64: 784, 128>}, {pipeline_mode = #tpu.pipeline_mode<synchronous>, transform_indices = @transform_2, window_bounds = array<i64: 1, 128>}, {transform_indices = @transform_3, window_bounds = array<i64: 2, 10>}]} {
    %c0 = arith.constant 0 : index
    %c0_0 = arith.constant 0 : index
    %0 = vector.load %arg1[%c0, %c0_0] : memref<2x784xf32, #tpu.memory_space<vmem>>, vector<2x784xf32>
    %c0_1 = arith.constant 0 : index
    %c0_2 = arith.constant 0 : index
    %1 = vector.load %arg2[%c0_1, %c0_2] : memref<784x128xf32, #tpu.memory_space<vmem>>, vector<784x128xf32>
    %c0_3 = arith.constant 0 : index
    %c0_4 = arith.constant 0 : index
    %2 = vector.load %arg3[%c0_3, %c0_4] : memref<1x128xf32, #tpu.memory_space<vmem>>, vector<1x128xf32>
    %cst = arith.constant dense<0.000000e+00> : vector<2x128xf32>
    %3 = tpu.matmul %0, %1, %cst {dimension_numbers = #tpu.dot_dimension_numbers<[1], [0], [0], [1], [0, 0, 1, 1], [], []>, precision = #tpu.contract_precision<fp32>} : vector<2x784xf32>, vector<784x128xf32>, vector<2x128xf32> -> vector<2x128xf32>
    %4 = vector.broadcast %2 : vector<1x128xf32> to vector<2x128xf32>
    %5 = arith.addf %3, %4 : vector<2x128xf32>
    %cst_5 = arith.constant dense<0xFF800000> : vector<2xf32>
    %6 = vector.multi_reduction <maximumf>, %5, %cst_5 [1] : vector<2x128xf32> to vector<2xf32>
    %7 = vector.shape_cast %6 : vector<2xf32> to vector<2x1xf32>
    %8 = vector.broadcast %7 : vector<2x1xf32> to vector<2x128xf32>
    %9 = arith.subf %5, %8 : vector<2x128xf32>
    %10 = math.exp %9 : vector<2x128xf32>
    %cst_6 = arith.constant dense<0.000000e+00> : vector<2xf32>
    %11 = vector.multi_reduction <add>, %10, %cst_6 [1] : vector<2x128xf32> to vector<2xf32>
    %12 = vector.shape_cast %11 : vector<2xf32> to vector<2x1xf32>
    %13 = vector.broadcast %12 : vector<2x1xf32> to vector<2x128xf32>
    %14 = arith.divf %10, %13 : vector<2x128xf32>
    %15 = vector.extract_strided_slice %14 {offsets = [0, 0], sizes = [2, 10], strides = [1, 1]} : vector<2x128xf32> to vector<2x10xf32>
    %c0_7 = arith.constant 0 : index
    %c0_8 = arith.constant 0 : index
    %16 = vector.load %arg4[%c0_7, %c0_8] : memref<2x10xf32, #tpu.memory_space<vmem>>, vector<2x10xf32>
    tpu.vector_store %arg4[%c0_7, %c0_8], %15 {strides = array<i32>} : memref<2x10xf32, #tpu.memory_space<vmem>>, vector<2x10xf32>,
    return
  }
  func.func @transform_0(%arg0: i32) -> (i32, i32) {
    %c0_i32 = arith.constant 0 : i32
    %c0_i32_0 = arith.constant 0 : i32
    return %arg0, %c0_i32 : i32, i32
  }
  func.func @transform_1(%arg0: i32) -> (i32, i32) {
    %c0_i32 = arith.constant 0 : i32
    %c0_i32_0 = arith.constant 0 : i32
    %c0_i32_1 = arith.constant 0 : i32
    return %c0_i32, %c0_i32_0 : i32, i32
  }
  func.func @transform_2(%arg0: i32) -> (i32, i32) {
    %c0_i32 = arith.constant 0 : i32
    %c0_i32_0 = arith.constant 0 : i32
    %c0_i32_1 = arith.constant 0 : i32
    return %c0_i32, %c0_i32_0 : i32, i32
  }
  func.func @transform_3(%arg0: i32) -> (i32, i32) {
    %c0_i32 = arith.constant 0 : i32
    %c0_i32_0 = arith.constant 0 : i32
    return %arg0, %c0_i32 : i32, i32
  }
}

</mosaic_0001>

<llo_original>
// kernel: tpu_custom_call.1
$region0: #{tpu_custom_call.1}
  #allocation0 [shape = 'u32[]', space=smem, size = 0x4, offset = 0x4, fixed_abs, tag = 'smem constant byte address 0x4 - core index']
  #allocation1 [shape = 'u32[144,128]{1,0:T(1,128)}', space=vmem, size = 0x12000, scoped, tag = 'internal scratch']
  %s0 = inlined_call_operand.hbm [shape: f32[2,784], index: 0, kind: input, shape index: {}]
  %s1 = inlined_call_operand.hbm [shape: f32[784,128], index: 1, kind: input, shape index: {}]
  %s2 = inlined_call_operand.vmem [shape: f32[1,128], index: 2, kind: input, shape index: {}]
  %s3 = inlined_call_operand.hbm [shape: f32[2,10], index: 3, kind: output, shape index: {}]
  %s4 = sld [smem:[#allocation0]]
  $region30: #{tpu_custom_call.1} parent=0
    _
  %s6 = ssub.s32 1, %s4
  %s7 = scalar_select 0, %s6, %s4
  $region1: #{tpu_custom_call.1} parent=0
    #allocation2 [shape = 'u8[7168]{0}', space=vmem, size = 0x1c00, scoped, tag = 'input window, operand 0, single buffered']
    #allocation3 [shape = 's32[1]{0}', space=sflag, size = 0x4, scoped, tag = 'scoped memory for tpu_custom_call.1']
    #allocation4 [shape = 's32[1]{0}', space=sflag, size = 0x4, scoped, tag = 'scoped memory for tpu_custom_call.1']
    #allocation5 [shape = 'u8[401408]{0}', space=vmem, size = 0x62000, scoped, tag = 'input window, operand 1, single buffered']
    #allocation6 [shape = 's32[1]{0}', space=sflag, size = 0x4, scoped, tag = 'scoped memory for tpu_custom_call.1']
    #allocation7 [shape = 'u8[1024]{0}', space=vmem, size = 0x400, scoped, tag = 'output window, operand 0, single buffered']
    %8 = vsyncpa [#allocation3], 0
    %9 = vsyncpa [#allocation6], 0
    %10 = vsyncpa [#allocation4], 0
    // Predicated region
    $region2: #{tpu_custom_call.1} parent=1 // pred_check
      _
    $region3: #{tpu_custom_call.1} parent=1 // pred_check_branch
      %12 = sbr.rel (0) target = $region5
    $region4: #{tpu_custom_call.1} parent=1 // pred_region
      %s14 = ssub.s32 224, 224
      %15 = vsyncadd [#allocation3], %s14
      %s17 = sshll.u32 [#allocation2], 4
      %s18 = int_to_ptr.vmem [resolvable:$true] %s17
      %20 = dma.hbm_to_vmem [thread:$0]  %s0, 224, %s18, [#allocation3]
    $region5: #{tpu_custom_call.1} parent=1 // pred_fallthru
      _
    // Predicated region
    $region6: #{tpu_custom_call.1} parent=1 // pred_check
      _
    $region7: #{tpu_custom_call.1} parent=1 // pred_check_branch
      %22 = sbr.rel (0) target = $region9
    $region8: #{tpu_custom_call.1} parent=1 // pred_region
      %s24 = ssub.s32 12544, 12544
      %25 = vsyncadd [#allocation6], %s24
      %s26 = sshll.u32 [#allocation5], 4
      %s27 = int_to_ptr.vmem [resolvable:$true] %s26
      %32 = dma.hbm_to_vmem [thread:$0]  %s1, 12544, %s27, [#allocation6], 128, 128, 8
    $region9: #{tpu_custom_call.1} parent=1 // pred_fallthru
      _
    // Predicated region
    $region10: #{tpu_custom_call.1} parent=1 // pred_check
      _
    $region11: #{tpu_custom_call.1} parent=1 // pred_check_branch
      %34 = sbr.rel (0) target = $region13
    $region12: #{tpu_custom_call.1} parent=1 // pred_region
      _
    $region13: #{tpu_custom_call.1} parent=1 // pred_fallthru
      _
    // Predicated region
    $region14: #{tpu_custom_call.1} parent=1 // pred_check
      _
    $region15: #{tpu_custom_call.1} parent=1 // pred_check_branch
      %36 = sbr.rel (0) target = $region17
    $region16: #{tpu_custom_call.1} parent=1 // pred_region
      %37 = dma.done [#allocation3], 224
    $region17: #{tpu_custom_call.1} parent=1 // pred_fallthru
      _
    // Predicated region
    $region18: #{tpu_custom_call.1} parent=1 // pred_check
      _
    $region19: #{tpu_custom_call.1} parent=1 // pred_check_branch
      %39 = sbr.rel (0) target = $region21
    $region20: #{tpu_custom_call.1} parent=1 // pred_region
      %40 = dma.done [#allocation6], 12544
    $region21: #{tpu_custom_call.1} parent=1 // pred_fallthru
      _
    %v41 = vld [vmem:[#allocation2] sm:$0xff]
    %v42 = vld [vmem:[#allocation2 + $0x8] sm:$0x3f]
    %v43 = vld [vmem:[#allocation5] sm:$0xff]
    %v44 = vld [vmem:[#allocation5 + $0x8] sm:$0xff]
    %v45 = vld [vmem:[#allocation5 + $0x10] sm:$0xff]
    %v46 = vld [vmem:[#allocation5 + $0x18] sm:$0xff]
    %v47 = vld [vmem:[#allocation5 + $0x20] sm:$0xff]
    %v48 = vld [vmem:[#allocation5 + $0x28] sm:$0xff]
    %v49 = vld [vmem:[#allocation5 + $0x30] sm:$0xff]
    %v50 = vld [vmem:[#allocation5 + $0x38] sm:$0xff]
    %v51 = vld [vmem:[#allocation5 + $0x40] sm:$0xff]
    %v52 = vld [vmem:[#allocation5 + $0x48] sm:$0xff]
    %v53 = vld [vmem:[#allocation5 + $0x50] sm:$0xff]
    %v54 = vld [vmem:[#allocation5 + $0x58] sm:$0xff]
    %v55 = vld [vmem:[#allocation5 + $0x60] sm:$0xff]
    %v56 = vld [vmem:[#allocation5 + $0x68] sm:$0xff]
    %v57 = vld [vmem:[#allocation5 + $0x70] sm:$0xff]
    %v58 = vld [vmem:[#allocation5 + $0x78] sm:$0xff]
    %v59 = vld [vmem:[#allocation5 + $0x80] sm:$0xff]
    %v60 = vld [vmem:[#allocation5 + $0x88] sm:$0xff]
    %v61 = vld [vmem:[#allocation5 + $0x90] sm:$0xff]
    %v62 = vld [vmem:[#allocation5 + $0x98] sm:$0xff]
    %v63 = vld [vmem:[#allocation5 + $0xa0] sm:$0xff]
    %v64 = vld [vmem:[#allocation5 + $0xa8] sm:$0xff]
    %v65 = vld [vmem:[#allocation5 + $0xb0] sm:$0xff]
    %v66 = vld [vmem:[#allocation5 + $0xb8] sm:$0xff]
    %v67 = vld [vmem:[#allocation5 + $0xc0] sm:$0xff]
    %v68 = vld [vmem:[#allocation5 + $0xc8] sm:$0xff]
    %v69 = vld [vmem:[#allocation5 + $0xd0] sm:$0xff]
    %v70 = vld [vmem:[#allocation5 + $0xd8] sm:$0xff]
    %v71 = vld [vmem:[#allocation5 + $0xe0] sm:$0xff]
    %v72 = vld [vmem:[#allocation5 + $0xe8] sm:$0xff]
    %v73 = vld [vmem:[#allocation5 + $0xf0] sm:$0xff]
    %v74 = vld [vmem:[#allocation5 + $0xf8] sm:$0xff]
    %v75 = vld [vmem:[#allocation5 + $0x100] sm:$0xff]
    %v76 = vld [vmem:[#allocation5 + $0x108] sm:$0xff]
    %v77 = vld [vmem:[#allocation5 + $0x110] sm:$0xff]
    %v78 = vld [vmem:[#allocation5 + $0x118] sm:$0xff]
    %v79 = vld [vmem:[#allocation5 + $0x120] sm:$0xff]
    %v80 = vld [vmem:[#allocation5 + $0x128] sm:$0xff]
    %v81 = vld [vmem:[#allocation5 + $0x130] sm:$0xff]
    %v82 = vld [vmem:[#allocation5 + $0x138] sm:$0xff]
    %v83 = vld [vmem:[#allocation5 + $0x140] sm:$0xff]
    %v84 = vld [vmem:[#allocation5 + $0x148] sm:$0xff]
    %v85 = vld [vmem:[#allocation5 + $0x150] sm:$0xff]
    %v86 = vld [vmem:[#allocation5 + $0x158] sm:$0xff]
    %v87 = vld [vmem:[#allocation5 + $0x160] sm:$0xff]
    %v88 = vld [vmem:[#allocation5 + $0x168] sm:$0xff]
    %v89 = vld [vmem:[#allocation5 + $0x170] sm:$0xff]
    %v90 = vld [vmem:[#allocation5 + $0x178] sm:$0xff]
    %v91 = vld [vmem:[#allocation5 + $0x180] sm:$0xff]
    %v92 = vld [vmem:[#allocation5 + $0x188] sm:$0xff]
    %v93 = vld [vmem:[#allocation5 + $0x190] sm:$0xff]
    %v94 = vld [vmem:[#allocation5 + $0x198] sm:$0xff]
    %v95 = vld [vmem:[#allocation5 + $0x1a0] sm:$0xff]
    %v96 = vld [vmem:[#allocation5 + $0x1a8] sm:$0xff]
    %v97 = vld [vmem:[#allocation5 + $0x1b0] sm:$0xff]
    %v98 = vld [vmem:[#allocation5 + $0x1b8] sm:$0xff]
    %v99 = vld [vmem:[#allocation5 + $0x1c0] sm:$0xff]
    %v100 = vld [vmem:[#allocation5 + $0x1c8] sm:$0xff]
    %v101 = vld [vmem:[#allocation5 + $0x1d0] sm:$0xff]
    %v102 = vld [vmem:[#allocation5 + $0x1d8] sm:$0xff]
    %v103 = vld [vmem:[#allocation5 + $0x1e0] sm:$0xff]
    %v104 = vld [vmem:[#allocation5 + $0x1e8] sm:$0xff]
    %v105 = vld [vmem:[#allocation5 + $0x1f0] sm:$0xff]
    %v106 = vld [vmem:[#allocation5 + $0x1f8] sm:$0xff]
    %v107 = vld [vmem:[#allocation5 + $0x200] sm:$0xff]
    %v108 = vld [vmem:[#allocation5 + $0x208] sm:$0xff]
    %v109 = vld [vmem:[#allocation5 + $0x210] sm:$0xff]
    %v110 = vld [vmem:[#allocation5 + $0x218] sm:$0xff]
    %v111 = vld [vmem:[#allocation5 + $0x220] sm:$0xff]
    %v112 = vld [vmem:[#allocation5 + $0x228] sm:$0xff]
    %v113 = vld [vmem:[#allocation5 + $0x230] sm:$0xff]
    %v114 = vld [vmem:[#allocation5 + $0x238] sm:$0xff]
    %v115 = vld [vmem:[#allocation5 + $0x240] sm:$0xff]
    %v116 = vld [vmem:[#allocation5 + $0x248] sm:$0xff]
    %v117 = vld [vmem:[#allocation5 + $0x250] sm:$0xff]
    %v118 = vld [vmem:[#allocation5 + $0x258] sm:$0xff]
    %v119 = vld [vmem:[#allocation5 + $0x260] sm:$0xff]
    %v120 = vld [vmem:[#allocation5 + $0x268] sm:$0xff]
    %v121 = vld [vmem:[#allocation5 + $0x270] sm:$0xff]
    %v122 = vld [vmem:[#allocation5 + $0x278] sm:$0xff]
    %v123 = vld [vmem:[#allocation5 + $0x280] sm:$0xff]
    %v124 = vld [vmem:[#allocation5 + $0x288] sm:$0xff]
    %v125 = vld [vmem:[#allocation5 + $0x290] sm:$0xff]
    %v126 = vld [vmem:[#allocation5 + $0x298] sm:$0xff]
    %v127 = vld [vmem:[#allocation5 + $0x2a0] sm:$0xff]
    %v128 = vld [vmem:[#allocation5 + $0x2a8] sm:$0xff]
    %v129 = vld [vmem:[#allocation5 + $0x2b0] sm:$0xff]
    %v130 = vld [vmem:[#allocation5 + $0x2b8] sm:$0xff]
    %v131 = vld [vmem:[#allocation5 + $0x2c0] sm:$0xff]
    %v132 = vld [vmem:[#allocation5 + $0x2c8] sm:$0xff]
    %v133 = vld [vmem:[#allocation5 + $0x2d0] sm:$0xff]
    %v134 = vld [vmem:[#allocation5 + $0x2d8] sm:$0xff]
    %v135 = vld [vmem:[#allocation5 + $0x2e0] sm:$0xff]
    %v136 = vld [vmem:[#allocation5 + $0x2e8] sm:$0xff]
    %v137 = vld [vmem:[#allocation5 + $0x2f0] sm:$0xff]
    %v138 = vld [vmem:[#allocation5 + $0x2f8] sm:$0xff]
    %v139 = vld [vmem:[#allocation5 + $0x300] sm:$0xff]
    %v140 = vld [vmem:[#allocation5 + $0x308] sm:$0xff]
    %v141 = vld [vmem:[%s2] sm:$0x1]
    %v143 = vlaneseq
    %v144 = vshrl.u32 %v143, 7
    %v145 = vsub.s32 0, %v144
    %v146 = vrot.slane %v141, %v145
    %v150 = vcombine.high %v41, %v41
    %v152 = vunpack.c.l.s4 1983009808
    %v153 = vunpack.c.0.s8 %v152
    %v154 = vlaneseq
    %v155 = vshrl.u32 %v154, 7
    %v156 = vsub.s32 %v153, %v155
    %v157 = vrot.slane %v41, %v156
    %v159 = vunpack.c.l.s4 1983009808
    %v160 = vunpack.c.0.s8 %v159
    %v161 = vlaneseq
    %v162 = vshrl.u32 %v161, 7
    %v163 = vsub.s32 %v160, %v162
    %v164 = vrot.slane %v150, %v163
    %v165 = vcombine.high %v157, %v157
    %v166 = vcombine.high %v164, %v164
    %v167 = vcombine.high %v42, %v42
    %v169 = vunpack.c.l.s4 1983009808
    %v170 = vunpack.c.0.s8 %v169
    %v171 = vlaneseq
    %v172 = vshrl.u32 %v171, 7
    %v173 = vsub.s32 %v170, %v172
    %v174 = vrot.slane %v42, %v173
    %v176 = vunpack.c.l.s4 1983009808
    %v177 = vunpack.c.0.s8 %v176
    %v178 = vlaneseq
    %v179 = vshrl.u32 %v178, 7
    %v180 = vsub.s32 %v177, %v179
    %v181 = vrot.slane %v167, %v180
    %v182 = vcombine.high %v174, %v174
    %vm189 = vcmask 130048
    %v190 = vsel %vm189, %v181, 0
    %192 = vmatprep.subr.mxu0 0.0
    %v193 = vand.u32 %v43, 4294901760
    %194 = vmatpush1.msra.mxu0 %v193
    %195 = vmatprep.subr.mxu0 0.0
    %v196 = vand.u32 %v44, 4294901760
    %197 = vmatpush1.msra.mxu0 %v196
    %198 = vmatprep.subr.mxu0 0.0
    %v199 = vand.u32 %v45, 4294901760
    %200 = vmatpush1.msra.mxu0 %v199
    %201 = vmatprep.subr.mxu0 0.0
    %v202 = vand.u32 %v46, 4294901760
    %203 = vmatpush1.msra.mxu0 %v202
    %204 = vmatprep.subr.mxu0 0.0
    %v205 = vand.u32 %v47, 4294901760
    %206 = vmatpush1.msra.mxu0 %v205
    %207 = vmatprep.subr.mxu0 0.0
    %v208 = vand.u32 %v48, 4294901760
    %209 = vmatpush1.msra.mxu0 %v208
    %210 = vmatprep.subr.mxu0 0.0
    %v211 = vand.u32 %v49, 4294901760
    %212 = vmatpush1.msra.mxu0 %v211
    %213 = vmatprep.subr.mxu0 0.0
    %v214 = vand.u32 %v50, 4294901760
    %215 = vmatpush1.msra.mxu0 %v214
    %216 = vmatprep.subr.mxu0 0.0
    %v217 = vand.u32 %v51, 4294901760
    %218 = vmatpush1.msra.mxu0 %v217
    %219 = vmatprep.subr.mxu0 0.0
    %v220 = vand.u32 %v52, 4294901760
    %221 = vmatpush1.msra.mxu0 %v220
    %222 = vmatprep.subr.mxu0 0.0
    %v223 = vand.u32 %v53, 4294901760
    %224 = vmatpush1.msra.mxu0 %v223
    %225 = vmatprep.subr.mxu0 0.0
    %v226 = vand.u32 %v54, 4294901760
    %227 = vmatpush1.msra.mxu0 %v226
    %228 = vmatprep.subr.mxu0 0.0
    %v229 = vand.u32 %v55, 4294901760
    %230 = vmatpush1.msra.mxu0 %v229
    %231 = vmatprep.subr.mxu0 0.0
    %v232 = vand.u32 %v56, 4294901760
    %233 = vmatpush1.msra.mxu0 %v232
    %234 = vmatprep.subr.mxu0 0.0
    %v235 = vand.u32 %v57, 4294901760
    %236 = vmatpush1.msra.mxu0 %v235
    %237 = vmatprep.subr.mxu0 0.0
    %v238 = vand.u32 %v58, 4294901760
    %239 = vmatpush1.msra.mxu0 %v238
    %240 = vmatprep.subr.mxu0 0.0
    %v241 = vand.u32 %v59, 4294901760
    %242 = vmatpush1.msra.mxu0 %v241
    %243 = vmatprep.subr.mxu0 0.0
    %v244 = vand.u32 %v60, 4294901760
    %245 = vmatpush1.msra.mxu0 %v244
    %246 = vmatprep.subr.mxu0 0.0
    %v247 = vand.u32 %v61, 4294901760
    %248 = vmatpush1.msra.mxu0 %v247
    %249 = vmatprep.subr.mxu0 0.0
    %v250 = vand.u32 %v62, 4294901760
    %251 = vmatpush1.msra.mxu0 %v250
    %252 = vmatprep.subr.mxu0 0.0
    %v253 = vand.u32 %v63, 4294901760
    %254 = vmatpush1.msra.mxu0 %v253
    %255 = vmatprep.subr.mxu0 0.0
    %v256 = vand.u32 %v64, 4294901760
    %257 = vmatpush1.msra.mxu0 %v256
    %258 = vmatprep.subr.mxu0 0.0
    %v259 = vand.u32 %v65, 4294901760
    %260 = vmatpush1.msra.mxu0 %v259
    %261 = vmatprep.subr.mxu0 0.0
    %v262 = vand.u32 %v66, 4294901760
    %263 = vmatpush1.msra.mxu0 %v262
    %264 = vmatprep.subr.mxu0 0.0
    %v265 = vand.u32 %v67, 4294901760
    %266 = vmatpush1.msra.mxu0 %v265
    %267 = vmatprep.subr.mxu0 0.0
    %v268 = vand.u32 %v68, 4294901760
    %269 = vmatpush1.msra.mxu0 %v268
    %270 = vmatprep.subr.mxu0 0.0
    %v271 = vand.u32 %v69, 4294901760
    %272 = vmatpush1.msra.mxu0 %v271
    %273 = vmatprep.subr.mxu0 0.0
    %v274 = vand.u32 %v70, 4294901760
    %275 = vmatpush1.msra.mxu0 %v274
    %276 = vmatprep.subr.mxu0 0.0
    %v277 = vand.u32 %v71, 4294901760
    %278 = vmatpush1.msra.mxu0 %v277
    %279 = vmatprep.subr.mxu0 0.0
    %v280 = vand.u32 %v72, 4294901760
    %281 = vmatpush1.msra.mxu0 %v280
    %282 = vmatprep.subr.mxu0 0.0
    %v283 = vand.u32 %v73, 4294901760
    %284 = vmatpush1.msra.mxu0 %v283
    %285 = vmatprep.subr.mxu0 0.0
    %v286 = vand.u32 %v74, 4294901760
    %287 = vmatpush1.msra.mxu0 %v286
    %v288 = vand.u32 %v165, 4294901760
    %v289 = vsub.f32 %v165, %v288
    %v290 = vand.u32 %v289, 4294901760
    %v291 = vsub.f32 %v289, %v290
    %v292 = vand.u32 %v291, 4294901760
    %293 = vmatprep.mubr.f32.mxu0 %v292
    %v294 = vand.u32 %v157, 4294901760
    %v295 = vsub.f32 %v157, %v294
    %v296 = vand.u32 %v295, 4294901760
    %v297 = vsub.f32 %v295, %v296
    %v298 = vand.u32 %v297, 4294901760
    %299 = vmatmul.mubr.f32.gmra.mrb[0].mxu0 %v298
    %v300 = vpop.f32.mrb[0].mxu0
    %v301 = vadd.f32 %v146, %v300
    %v302 = vpop.f32.mrb[0].mxu0
    %303 = vdwg.mxu0
    %304 = vmatprep.subr.mxu0 0.0
    %v305 = vand.u32 %v43, 4294901760
    %v306 = vsub.f32 %v43, %v305
    %v307 = vand.u32 %v306, 4294901760
    %v308 = vsub.f32 %v306, %v307
    %v309 = vand.u32 %v308, 4294901760
    %310 = vmatpush1.msra.mxu0 %v309
    %311 = vmatprep.subr.mxu0 0.0
    %v312 = vand.u32 %v44, 4294901760
    %v313 = vsub.f32 %v44, %v312
    %v314 = vand.u32 %v313, 4294901760
    %v315 = vsub.f32 %v313, %v314
    %v316 = vand.u32 %v315, 4294901760
    %317 = vmatpush1.msra.mxu0 %v316
    %318 = vmatprep.subr.mxu0 0.0
    %v319 = vand.u32 %v45, 4294901760
    %v320 = vsub.f32 %v45, %v319
    %v321 = vand.u32 %v320, 4294901760
    %v322 = vsub.f32 %v320, %v321
    %v323 = vand.u32 %v322, 4294901760
    %324 = vmatpush1.msra.mxu0 %v323
    %325 = vmatprep.subr.mxu0 0.0
    %v326 = vand.u32 %v46, 4294901760
    %v327 = vsub.f32 %v46, %v326
    %v328 = vand.u32 %v327, 4294901760
    %v329 = vsub.f32 %v327, %v328
    %v330 = vand.u32 %v329, 4294901760
    %331 = vmatpush1.msra.mxu0 %v330
    %332 = vmatprep.subr.mxu0 0.0
    %v333 = vand.u32 %v47, 4294901760
    %v334 = vsub.f32 %v47, %v333
    %v335 = vand.u32 %v334, 4294901760
    %v336 = vsub.f32 %v334, %v335
    %v337 = vand.u32 %v336, 4294901760
    %338 = vmatpush1.msra.mxu0 %v337
    %339 = vmatprep.subr.mxu0 0.0
    %v340 = vand.u32 %v48, 4294901760
    %v341 = vsub.f32 %v48, %v340
    %v342 = vand.u32 %v341, 4294901760
    %v343 = vsub.f32 %v341, %v342
    %v344 = vand.u32 %v343, 4294901760
    %345 = vmatpush1.msra.mxu0 %v344
    %346 = vmatprep.subr.mxu0 0.0
    %v347 = vand.u32 %v49, 4294901760
    %v348 = vsub.f32 %v49, %v347
    %v349 = vand.u32 %v348, 4294901760
    %v350 = vsub.f32 %v348, %v349
    %v351 = vand.u32 %v350, 4294901760
    %352 = vmatpush1.msra.mxu0 %v351
    %353 = vmatprep.subr.mxu0 0.0
    %v354 = vand.u32 %v50, 4294901760
    %v355 = vsub.f32 %v50, %v354
    %v356 = vand.u32 %v355, 4294901760
    %v357 = vsub.f32 %v355, %v356
    %v358 = vand.u32 %v357, 4294901760
    %359 = vmatpush1.msra.mxu0 %v358
    %360 = vmatprep.subr.mxu0 0.0
    %v361 = vand.u32 %v51, 4294901760
    %v362 = vsub.f32 %v51, %v361
    %v363 = vand.u32 %v362, 4294901760
    %v364 = vsub.f32 %v362, %v363
    %v365 = vand.u32 %v364, 4294901760
    %366 = vmatpush1.msra.mxu0 %v365
    %367 = vmatprep.subr.mxu0 0.0
    %v368 = vand.u32 %v52, 4294901760
    %v369 = vsub.f32 %v52, %v368
    %v370 = vand.u32 %v369, 4294901760
    %v371 = vsub.f32 %v369, %v370
    %v372 = vand.u32 %v371, 4294901760
    %373 = vmatpush1.msra.mxu0 %v372
    %374 = vmatprep.subr.mxu0 0.0
    %v375 = vand.u32 %v53, 4294901760
    %v376 = vsub.f32 %v53, %v375
    %v377 = vand.u32 %v376, 4294901760
    %v378 = vsub.f32 %v376, %v377
    %v379 = vand.u32 %v378, 4294901760
    %380 = vmatpush1.msra.mxu0 %v379
    %381 = vmatprep.subr.mxu0 0.0
    %v382 = vand.u32 %v54, 4294901760
    %v383 = vsub.f32 %v54, %v382
    %v384 = vand.u32 %v383, 4294901760
    %v385 = vsub.f32 %v383, %v384
    %v386 = vand.u32 %v385, 4294901760
    %387 = vmatpush1.msra.mxu0 %v386
    %388 = vmatprep.subr.mxu0 0.0
    %v389 = vand.u32 %v55, 4294901760
    %v390 = vsub.f32 %v55, %v389
    %v391 = vand.u32 %v390, 4294901760
    %v392 = vsub.f32 %v390, %v391
    %v393 = vand.u32 %v392, 4294901760
    %394 = vmatpush1.msra.mxu0 %v393
    %395 = vmatprep.subr.mxu0 0.0
    %v396 = vand.u32 %v56, 4294901760
    %v397 = vsub.f32 %v56, %v396
    %v398 = vand.u32 %v397, 4294901760
    %v399 = vsub.f32 %v397, %v398
    %v400 = vand.u32 %v399, 4294901760
    %401 = vmatpush1.msra.mxu0 %v400
    %402 = vmatprep.subr.mxu0 0.0
    %v403 = vand.u32 %v57, 4294901760
    %v404 = vsub.f32 %v57, %v403
    %v405 = vand.u32 %v404, 4294901760
    %v406 = vsub.f32 %v404, %v405
    %v407 = vand.u32 %v406, 4294901760
    %408 = vmatpush1.msra.mxu0 %v407
    %409 = vmatprep.subr.mxu0 0.0
    %v410 = vand.u32 %v58, 4294901760
    %v411 = vsub.f32 %v58, %v410
    %v412 = vand.u32 %v411, 4294901760
    %v413 = vsub.f32 %v411, %v412
    %v414 = vand.u32 %v413, 4294901760
    %415 = vmatpush1.msra.mxu0 %v414
    %416 = vmatprep.subr.mxu0 0.0
    %v417 = vand.u32 %v59, 4294901760
    %v418 = vsub.f32 %v59, %v417
    %v419 = vand.u32 %v418, 4294901760
    %v420 = vsub.f32 %v418, %v419
    %v421 = vand.u32 %v420, 4294901760
    %422 = vmatpush1.msra.mxu0 %v421
    %423 = vmatprep.subr.mxu0 0.0
    %v424 = vand.u32 %v60, 4294901760
    %v425 = vsub.f32 %v60, %v424
    %v426 = vand.u32 %v425, 4294901760
    %v427 = vsub.f32 %v425, %v426
    %v428 = vand.u32 %v427, 4294901760
    %429 = vmatpush1.msra.mxu0 %v428
    %430 = vmatprep.subr.mxu0 0.0
    %v431 = vand.u32 %v61, 4294901760
    %v432 = vsub.f32 %v61, %v431
    %v433 = vand.u32 %v432, 4294901760
    %v434 = vsub.f32 %v432, %v433
    %v435 = vand.u32 %v434, 4294901760
    %436 = vmatpush1.msra.mxu0 %v435
    %437 = vmatprep.subr.mxu0 0.0
    %v438 = vand.u32 %v62, 4294901760
    %v439 = vsub.f32 %v62, %v438
    %v440 = vand.u32 %v439, 4294901760
    %v441 = vsub.f32 %v439, %v440
    %v442 = vand.u32 %v441, 4294901760
    %443 = vmatpush1.msra.mxu0 %v442
    %444 = vmatprep.subr.mxu0 0.0
    %v445 = vand.u32 %v63, 4294901760
    %v446 = vsub.f32 %v63, %v445
    %v447 = vand.u32 %v446, 4294901760
    %v448 = vsub.f32 %v446, %v447
    %v449 = vand.u32 %v448, 4294901760
    %450 = vmatpush1.msra.mxu0 %v449
    %451 = vmatprep.subr.mxu0 0.0
    %v452 = vand.u32 %v64, 4294901760
    %v453 = vsub.f32 %v64, %v452
    %v454 = vand.u32 %v453, 4294901760
    %v455 = vsub.f32 %v453, %v454
    %v456 = vand.u32 %v455, 4294901760
    %457 = vmatpush1.msra.mxu0 %v456
    %458 = vmatprep.subr.mxu0 0.0
    %v459 = vand.u32 %v65, 4294901760
    %v460 = vsub.f32 %v65, %v459
    %v461 = vand.u32 %v460, 4294901760
    %v462 = vsub.f32 %v460, %v461
    %v463 = vand.u32 %v462, 4294901760
    %464 = vmatpush1.msra.mxu0 %v463
    %465 = vmatprep.subr.mxu0 0.0
    %v466 = vand.u32 %v66, 4294901760
    %v467 = vsub.f32 %v66, %v466
    %v468 = vand.u32 %v467, 4294901760
    %v469 = vsub.f32 %v467, %v468
    %v470 = vand.u32 %v469, 4294901760
    %471 = vmatpush1.msra.mxu0 %v470
    %472 = vmatprep.subr.mxu0 0.0
    %v473 = vand.u32 %v67, 4294901760
    %v474 = vsub.f32 %v67, %v473
    %v475 = vand.u32 %v474, 4294901760
    %v476 = vsub.f32 %v474, %v475
    %v477 = vand.u32 %v476, 4294901760
    %478 = vmatpush1.msra.mxu0 %v477
    %479 = vmatprep.subr.mxu0 0.0
    %v480 = vand.u32 %v68, 4294901760
    %v481 = vsub.f32 %v68, %v480
    %v482 = vand.u32 %v481, 4294901760
    %v483 = vsub.f32 %v481, %v482
    %v484 = vand.u32 %v483, 4294901760
    %485 = vmatpush1.msra.mxu0 %v484
    %486 = vmatprep.subr.mxu0 0.0
    %v487 = vand.u32 %v69, 4294901760
    %v488 = vsub.f32 %v69, %v487
    %v489 = vand.u32 %v488, 4294901760
    %v490 = vsub.f32 %v488, %v489
    %v491 = vand.u32 %v490, 4294901760
    %492 = vmatpush1.msra.mxu0 %v491
    %493 = vmatprep.subr.mxu0 0.0
    %v494 = vand.u32 %v70, 4294901760
    %v495 = vsub.f32 %v70, %v494
    %v496 = vand.u32 %v495, 4294901760
    %v497 = vsub.f32 %v495, %v496
    %v498 = vand.u32 %v497, 4294901760
    %499 = vmatpush1.msra.mxu0 %v498
    %500 = vmatprep.subr.mxu0 0.0
    %v501 = vand.u32 %v71, 4294901760
    %v502 = vsub.f32 %v71, %v501
    %v503 = vand.u32 %v502, 4294901760
    %v504 = vsub.f32 %v502, %v503
    %v505 = vand.u32 %v504, 4294901760
    %506 = vmatpush1.msra.mxu0 %v505
    %507 = vmatprep.subr.mxu0 0.0
    %v508 = vand.u32 %v72, 4294901760
    %v509 = vsub.f32 %v72, %v508
    %v510 = vand.u32 %v509, 4294901760
    %v511 = vsub.f32 %v509, %v510
    %v512 = vand.u32 %v511, 4294901760
    %513 = vmatpush1.msra.mxu0 %v512
    %514 = vmatprep.subr.mxu0 0.0
    %v515 = vand.u32 %v73, 4294901760
    %v516 = vsub.f32 %v73, %v515
    %v517 = vand.u32 %v516, 4294901760
    %v518 = vsub.f32 %v516, %v517
    %v519 = vand.u32 %v518, 4294901760
    %520 = vmatpush1.msra.mxu0 %v519
    %521 = vmatprep.subr.mxu0 0.0
    %v522 = vand.u32 %v74, 4294901760
    %v523 = vsub.f32 %v74, %v522
    %v524 = vand.u32 %v523, 4294901760
    %v525 = vsub.f32 %v523, %v524
    %v526 = vand.u32 %v525, 4294901760
    %527 = vmatpush1.msra.mxu0 %v526
    %v528 = vand.u32 %v165, 4294901760
    %529 = vmatprep.mubr.f32.mxu0 %v528
    %v530 = vand.u32 %v157, 4294901760
    %531 = vmatmul.mubr.f32.gmra.mrb[0].mxu0 %v530
    %v532 = vpop.f32.mrb[0].mxu0
    %v533 = vadd.f32 %v301, %v532
    %v534 = vpop.f32.mrb[0].mxu0
    %535 = vdwg.mxu0
    %536 = vmatprep.subr.mxu0 0.0
    %v537 = vand.u32 %v43, 4294901760
    %v538 = vsub.f32 %v43, %v537
    %539 = vmatpush1.msra.mxu0 %v538
    %540 = vmatprep.subr.mxu0 0.0
    %v541 = vand.u32 %v44, 4294901760
    %v542 = vsub.f32 %v44, %v541
    %543 = vmatpush1.msra.mxu0 %v542
    %544 = vmatprep.subr.mxu0 0.0
    %v545 = vand.u32 %v45, 4294901760
    %v546 = vsub.f32 %v45, %v545
    %547 = vmatpush1.msra.mxu0 %v546
    %548 = vmatprep.subr.mxu0 0.0
    %v549 = vand.u32 %v46, 4294901760
    %v550 = vsub.f32 %v46, %v549
    %551 = vmatpush1.msra.mxu0 %v550
    %552 = vmatprep.subr.mxu0 0.0
    %v553 = vand.u32 %v47, 4294901760
    %v554 = vsub.f32 %v47, %v553
    %555 = vmatpush1.msra.mxu0 %v554
    %556 = vmatprep.subr.mxu0 0.0
    %v557 = vand.u32 %v48, 4294901760
    %v558 = vsub.f32 %v48, %v557
    %559 = vmatpush1.msra.mxu0 %v558
    %560 = vmatprep.subr.mxu0 0.0
    %v561 = vand.u32 %v49, 4294901760
    %v562 = vsub.f32 %v49, %v561
    %563 = vmatpush1.msra.mxu0 %v562
    %564 = vmatprep.subr.mxu0 0.0
    %v565 = vand.u32 %v50, 4294901760
    %v566 = vsub.f32 %v50, %v565
    %567 = vmatpush1.msra.mxu0 %v566
    %568 = vmatprep.subr.mxu0 0.0
    %v569 = vand.u32 %v51, 4294901760
    %v570 = vsub.f32 %v51, %v569
    %571 = vmatpush1.msra.mxu0 %v570
    %572 = vmatprep.subr.mxu0 0.0
    %v573 = vand.u32 %v52, 4294901760
    %v574 = vsub.f32 %v52, %v573
    %575 = vmatpush1.msra.mxu0 %v574
    %576 = vmatprep.subr.mxu0 0.0
    %v577 = vand.u32 %v53, 4294901760
    %v578 = vsub.f32 %v53, %v577
    %579 = vmatpush1.msra.mxu0 %v578
    %580 = vmatprep.subr.mxu0 0.0
    %v581 = vand.u32 %v54, 4294901760
    %v582 = vsub.f32 %v54, %v581
    %583 = vmatpush1.msra.mxu0 %v582
    %584 = vmatprep.subr.mxu0 0.0
    %v585 = vand.u32 %v55, 4294901760
    %v586 = vsub.f32 %v55, %v585
    %587 = vmatpush1.msra.mxu0 %v586
    %588 = vmatprep.subr.mxu0 0.0
    %v589 = vand.u32 %v56, 4294901760
    %v590 = vsub.f32 %v56, %v589
    %591 = vmatpush1.msra.mxu0 %v590
    %592 = vmatprep.subr.mxu0 0.0
    %v593 = vand.u32 %v57, 4294901760
    %v594 = vsub.f32 %v57, %v593
    %595 = vmatpush1.msra.mxu0 %v594
    %596 = vmatprep.subr.mxu0 0.0
    %v597 = vand.u32 %v58, 4294901760
    %v598 = vsub.f32 %v58, %v597
    %599 = vmatpush1.msra.mxu0 %v598
    %600 = vmatprep.subr.mxu0 0.0
    %v601 = vand.u32 %v59, 4294901760
    %v602 = vsub.f32 %v59, %v601
    %603 = vmatpush1.msra.mxu0 %v602
    %604 = vmatprep.subr.mxu0 0.0
    %v605 = vand.u32 %v60, 4294901760
    %v606 = vsub.f32 %v60, %v605
    %607 = vmatpush1.msra.mxu0 %v606
    %608 = vmatprep.subr.mxu0 0.0
    %v609 = vand.u32 %v61, 4294901760
    %v610 = vsub.f32 %v61, %v609
    %611 = vmatpush1.msra.mxu0 %v610
    %612 = vmatprep.subr.mxu0 0.0
    %v613 = vand.u32 %v62, 4294901760
    %v614 = vsub.f32 %v62, %v613
    %615 = vmatpush1.msra.mxu0 %v614
    %616 = vmatprep.subr.mxu0 0.0
    %v617 = vand.u32 %v63, 4294901760
    %v618 = vsub.f32 %v63, %v617
    %619 = vmatpush1.msra.mxu0 %v618
    %620 = vmatprep.subr.mxu0 0.0
    %v621 = vand.u32 %v64, 4294901760
    %v622 = vsub.f32 %v64, %v621
    %623 = vmatpush1.msra.mxu0 %v622
    %624 = vmatprep.subr.mxu0 0.0
    %v625 = vand.u32 %v65, 4294901760
    %v626 = vsub.f32 %v65, %v625
    %627 = vmatpush1.msra.mxu0 %v626
    %628 = vmatprep.subr.mxu0 0.0
    %v629 = vand.u32 %v66, 4294901760
    %v630 = vsub.f32 %v66, %v629
    %631 = vmatpush1.msra.mxu0 %v630
    %632 = vmatprep.subr.mxu0 0.0
    %v633 = vand.u32 %v67, 4294901760
    %v634 = vsub.f32 %v67, %v633
    %635 = vmatpush1.msra.mxu0 %v634
    %636 = vmatprep.subr.mxu0 0.0
    %v637 = vand.u32 %v68, 4294901760
    %v638 = vsub.f32 %v68, %v637
    %639 = vmatpush1.msra.mxu0 %v638
    %640 = vmatprep.subr.mxu0 0.0
    %v641 = vand.u32 %v69, 4294901760
    %v642 = vsub.f32 %v69, %v641
    %643 = vmatpush1.msra.mxu0 %v642
    %644 = vmatprep.subr.mxu0 0.0
    %v645 = vand.u32 %v70, 4294901760
    %v646 = vsub.f32 %v70, %v645
    %647 = vmatpush1.msra.mxu0 %v646
    %648 = vmatprep.subr.mxu0 0.0
    %v649 = vand.u32 %v71, 4294901760
    %v650 = vsub.f32 %v71, %v649
    %651 = vmatpush1.msra.mxu0 %v650
    %652 = vmatprep.subr.mxu0 0.0
    %v653 = vand.u32 %v72, 4294901760
    %v654 = vsub.f32 %v72, %v653
    %655 = vmatpush1.msra.mxu0 %v654
    %656 = vmatprep.subr.mxu0 0.0
    %v657 = vand.u32 %v73, 4294901760
    %v658 = vsub.f32 %v73, %v657
    %659 = vmatpush1.msra.mxu0 %v658
    %660 = vmatprep.subr.mxu0 0.0
    %v661 = vand.u32 %v74, 4294901760
    %v662 = vsub.f32 %v74, %v661
    %663 = vmatpush1.msra.mxu0 %v662
    %v664 = vand.u32 %v165, 4294901760
    %v665 = vsub.f32 %v165, %v664
    %666 = vmatprep.mubr.f32.mxu0 %v665
    %v667 = vand.u32 %v157, 4294901760
    %v668 = vsub.f32 %v157, %v667
    %669 = vmatmul.mubr.f32.gmra.mrb[0].mxu0 %v668
    %v670 = vpop.f32.mrb[0].mxu0
    %v671 = vadd.f32 %v533, %v670
    %v672 = vpop.f32.mrb[0].mxu0
    %673 = vdwg.mxu0
    %674 = vmatprep.subr.mxu0 0.0
    %v675 = vand.u32 %v43, 4294901760
    %676 = vmatpush1.msra.mxu0 %v675
    %677 = vmatprep.subr.mxu0 0.0
    %v678 = vand.u32 %v44, 4294901760
    %679 = vmatpush1.msra.mxu0 %v678
    %680 = vmatprep.subr.mxu0 0.0
    %v681 = vand.u32 %v45, 4294901760
    %682 = vmatpush1.msra.mxu0 %v681
    %683 = vmatprep.subr.mxu0 0.0
    %v684 = vand.u32 %v46, 4294901760
    %685 = vmatpush1.msra.mxu0 %v684
    %686 = vmatprep.subr.mxu0 0.0
    %v687 = vand.u32 %v47, 4294901760
    %688 = vmatpush1.msra.mxu0 %v687
    %689 = vmatprep.subr.mxu0 0.0
    %v690 = vand.u32 %v48, 4294901760
    %691 = vmatpush1.msra.mxu0 %v690
    %692 = vmatprep.subr.mxu0 0.0
    %v693 = vand.u32 %v49, 4294901760
    %694 = vmatpush1.msra.mxu0 %v693
    %695 = vmatprep.subr.mxu0 0.0
    %v696 = vand.u32 %v50, 4294901760
    %697 = vmatpush1.msra.mxu0 %v696
    %698 = vmatprep.subr.mxu0 0.0
    %v699 = vand.u32 %v51, 4294901760
    %700 = vmatpush1.msra.mxu0 %v699
    %701 = vmatprep.subr.mxu0 0.0
    %v702 = vand.u32 %v52, 4294901760
    %703 = vmatpush1.msra.mxu0 %v702
    %704 = vmatprep.subr.mxu0 0.0
    %v705 = vand.u32 %v53, 4294901760
    %706 = vmatpush1.msra.mxu0 %v705
    %707 = vmatprep.subr.mxu0 0.0
    %v708 = vand.u32 %v54, 4294901760
    %709 = vmatpush1.msra.mxu0 %v708
    %710 = vmatprep.subr.mxu0 0.0
    %v711 = vand.u32 %v55, 4294901760
    %712 = vmatpush1.msra.mxu0 %v711
    %713 = vmatprep.subr.mxu0 0.0
    %v714 = vand.u32 %v56, 4294901760
    %715 = vmatpush1.msra.mxu0 %v714
    %716 = vmatprep.subr.mxu0 0.0
    %v717 = vand.u32 %v57, 4294901760
    %718 = vmatpush1.msra.mxu0 %v717
    %719 = vmatprep.subr.mxu0 0.0
    %v720 = vand.u32 %v58, 4294901760
    %721 = vmatpush1.msra.mxu0 %v720
    %722 = vmatprep.subr.mxu0 0.0
    %v723 = vand.u32 %v59, 4294901760
    %724 = vmatpush1.msra.mxu0 %v723
    %725 = vmatprep.subr.mxu0 0.0
    %v726 = vand.u32 %v60, 4294901760
    %727 = vmatpush1.msra.mxu0 %v726
    %728 = vmatprep.subr.mxu0 0.0
    %v729 = vand.u32 %v61, 4294901760
    %730 = vmatpush1.msra.mxu0 %v729
    %731 = vmatprep.subr.mxu0 0.0
    %v732 = vand.u32 %v62, 4294901760
    %733 = vmatpush1.msra.mxu0 %v732
    %734 = vmatprep.subr.mxu0 0.0
    %v735 = vand.u32 %v63, 4294901760
    %736 = vmatpush1.msra.mxu0 %v735
    %737 = vmatprep.subr.mxu0 0.0
    %v738 = vand.u32 %v64, 4294901760
    %739 = vmatpush1.msra.mxu0 %v738
    %740 = vmatprep.subr.mxu0 0.0
    %v741 = vand.u32 %v65, 4294901760
    %742 = vmatpush1.msra.mxu0 %v741
    %743 = vmatprep.subr.mxu0 0.0
    %v744 = vand.u32 %v66, 4294901760
    %745 = vmatpush1.msra.mxu0 %v744
    %746 = vmatprep.subr.mxu0 0.0
    %v747 = vand.u32 %v67, 4294901760
    %748 = vmatpush1.msra.mxu0 %v747
    %749 = vmatprep.subr.mxu0 0.0
    %v750 = vand.u32 %v68, 4294901760
    %751 = vmatpush1.msra.mxu0 %v750
    %752 = vmatprep.subr.mxu0 0.0
    %v753 = vand.u32 %v69, 4294901760
    %754 = vmatpush1.msra.mxu0 %v753
    %755 = vmatprep.subr.mxu0 0.0
    %v756 = vand.u32 %v70, 4294901760
    %757 = vmatpush1.msra.mxu0 %v756
    %758 = vmatprep.subr.mxu0 0.0
    %v759 = vand.u32 %v71, 4294901760
    %760 = vmatpush1.msra.mxu0 %v759
    %761 = vmatprep.subr.mxu0 0.0
    %v762 = vand.u32 %v72, 4294901760
    %763 = vmatpush1.msra.mxu0 %v762
    %764 = vmatprep.subr.mxu0 0.0
    %v765 = vand.u32 %v73, 4294901760
    %766 = vmatpush1.msra.mxu0 %v765
    %767 = vmatprep.subr.mxu0 0.0
    %v768 = vand.u32 %v74, 4294901760
    %769 = vmatpush1.msra.mxu0 %v768
    %v770 = vand.u32 %v165, 4294901760
    %v771 = vsub.f32 %v165, %v770
    %v772 = vand.u32 %v771, 4294901760
    %773 = vmatprep.mubr.f32.mxu0 %v772
    %v774 = vand.u32 %v157, 4294901760
    %v775 = vsub.f32 %v157, %v774
    %v776 = vand.u32 %v775, 4294901760
    %777 = vmatmul.mubr.f32.gmra.mrb[0].mxu0 %v776
    %v778 = vpop.f32.mrb[0].mxu0
    %v779 = vadd.f32 %v671, %v778
    %v780 = vpop.f32.mrb[0].mxu0
    %781 = vdwg.mxu0
    %782 = vmatprep.subr.mxu0 0.0
    %v783 = vand.u32 %v43, 4294901760
    %v784 = vsub.f32 %v43, %v783
    %v785 = vand.u32 %v784, 4294901760
    %786 = vmatpush1.msra.mxu0 %v785
    %787 = vmatprep.subr.mxu0 0.0
    %v788 = vand.u32 %v44, 4294901760
    %v789 = vsub.f32 %v44, %v788
    %v790 = vand.u32 %v789, 4294901760
    %791 = vmatpush1.msra.mxu0 %v790
    %792 = vmatprep.subr.mxu0 0.0
    %v793 = vand.u32 %v45, 4294901760
    %v794 = vsub.f32 %v45, %v793
    %v795 = vand.u32 %v794, 4294901760
    %796 = vmatpush1.msra.mxu0 %v795
    %797 = vmatprep.subr.mxu0 0.0
    %v798 = vand.u32 %v46, 4294901760
    %v799 = vsub.f32 %v46, %v798
    %v800 = vand.u32 %v799, 4294901760
    %801 = vmatpush1.msra.mxu0 %v800
    %802 = vmatprep.subr.mxu0 0.0
    %v803 = vand.u32 %v47, 4294901760
    %v804 = vsub.f32 %v47, %v803
    %v805 = vand.u32 %v804, 4294901760
    %806 = vmatpush1.msra.mxu0 %v805
    %807 = vmatprep.subr.mxu0 0.0
    %v808 = vand.u32 %v48, 4294901760
    %v809 = vsub.f32 %v48, %v808
    %v810 = vand.u32 %v809, 4294901760
    %811 = vmatpush1.msra.mxu0 %v810
    %812 = vmatprep.subr.mxu0 0.0
    %v813 = vand.u32 %v49, 4294901760
    %v814 = vsub.f32 %v49, %v813
    %v815 = vand.u32 %v814, 4294901760
    %816 = vmatpush1.msra.mxu0 %v815
    %817 = vmatprep.subr.mxu0 0.0
    %v818 = vand.u32 %v50, 4294901760
    %v819 = vsub.f32 %v50, %v818
    %v820 = vand.u32 %v819, 4294901760
    %821 = vmatpush1.msra.mxu0 %v820
    %822 = vmatprep.subr.mxu0 0.0
    %v823 = vand.u32 %v51, 4294901760
    %v824 = vsub.f32 %v51, %v823
    %v825 = vand.u32 %v824, 4294901760
    %826 = vmatpush1.msra.mxu0 %v825
    %827 = vmatprep.subr.mxu0 0.0
    %v828 = vand.u32 %v52, 4294901760
    %v829 = vsub.f32 %v52, %v828
    %v830 = vand.u32 %v829, 4294901760
    %831 = vmatpush1.msra.mxu0 %v830
    %832 = vmatprep.subr.mxu0 0.0
    %v833 = vand.u32 %v53, 4294901760
    %v834 = vsub.f32 %v53, %v833
    %v835 = vand.u32 %v834, 4294901760
    %836 = vmatpush1.msra.mxu0 %v835
    %837 = vmatprep.subr.mxu0 0.0
    %v838 = vand.u32 %v54, 4294901760
    %v839 = vsub.f32 %v54, %v838
    %v840 = vand.u32 %v839, 4294901760
    %841 = vmatpush1.msra.mxu0 %v840
    %842 = vmatprep.subr.mxu0 0.0
    %v843 = vand.u32 %v55, 4294901760
    %v844 = vsub.f32 %v55, %v843
    %v845 = vand.u32 %v844, 4294901760
    %846 = vmatpush1.msra.mxu0 %v845
    %847 = vmatprep.subr.mxu0 0.0
    %v848 = vand.u32 %v56, 4294901760
    %v849 = vsub.f32 %v56, %v848
    %v850 = vand.u32 %v849, 4294901760
    %851 = vmatpush1.msra.mxu0 %v850
    %852 = vmatprep.subr.mxu0 0.0
    %v853 = vand.u32 %v57, 4294901760
    %v854 = vsub.f32 %v57, %v853
    %v855 = vand.u32 %v854, 4294901760
    %856 = vmatpush1.msra.mxu0 %v855
    %857 = vmatprep.subr.mxu0 0.0
    %v858 = vand.u32 %v58, 4294901760
    %v859 = vsub.f32 %v58, %v858
    %v860 = vand.u32 %v859, 4294901760
    %861 = vmatpush1.msra.mxu0 %v860
    %862 = vmatprep.subr.mxu0 0.0
    %v863 = vand.u32 %v59, 4294901760
    %v864 = vsub.f32 %v59, %v863
    %v865 = vand.u32 %v864, 4294901760
    %866 = vmatpush1.msra.mxu0 %v865
    %867 = vmatprep.subr.mxu0 0.0
    %v868 = vand.u32 %v60, 4294901760
    %v869 = vsub.f32 %v60, %v868
    %v870 = vand.u32 %v869, 4294901760
    %871 = vmatpush1.msra.mxu0 %v870
    %872 = vmatprep.subr.mxu0 0.0
    %v873 = vand.u32 %v61, 4294901760
    %v874 = vsub.f32 %v61, %v873
    %v875 = vand.u32 %v874, 4294901760
    %876 = vmatpush1.msra.mxu0 %v875
    %877 = vmatprep.subr.mxu0 0.0
    %v878 = vand.u32 %v62, 4294901760
    %v879 = vsub.f32 %v62, %v878
    %v880 = vand.u32 %v879, 4294901760
    %881 = vmatpush1.msra.mxu0 %v880
    %882 = vmatprep.subr.mxu0 0.0
    %v883 = vand.u32 %v63, 4294901760
    %v884 = vsub.f32 %v63, %v883
    %v885 = vand.u32 %v884, 4294901760
    %886 = vmatpush1.msra.mxu0 %v885
    %887 = vmatprep.subr.mxu0 0.0
    %v888 = vand.u32 %v64, 4294901760
    %v889 = vsub.f32 %v64, %v888
    %v890 = vand.u32 %v889, 4294901760
    %891 = vmatpush1.msra.mxu0 %v890
    %892 = vmatprep.subr.mxu0 0.0
    %v893 = vand.u32 %v65, 4294901760
    %v894 = vsub.f32 %v65, %v893
    %v895 = vand.u32 %v894, 4294901760
    %896 = vmatpush1.msra.mxu0 %v895
    %897 = vmatprep.subr.mxu0 0.0
    %v898 = vand.u32 %v66, 4294901760
    %v899 = vsub.f32 %v66, %v898
    %v900 = vand.u32 %v899, 4294901760
    %901 = vmatpush1.msra.mxu0 %v900
    %902 = vmatprep.subr.mxu0 0.0
    %v903 = vand.u32 %v67, 4294901760
    %v904 = vsub.f32 %v67, %v903
    %v905 = vand.u32 %v904, 4294901760
    %906 = vmatpush1.msra.mxu0 %v905
    %907 = vmatprep.subr.mxu0 0.0
    %v908 = vand.u32 %v68, 4294901760
    %v909 = vsub.f32 %v68, %v908
    %v910 = vand.u32 %v909, 4294901760
    %911 = vmatpush1.msra.mxu0 %v910
    %912 = vmatprep.subr.mxu0 0.0
    %v913 = vand.u32 %v69, 4294901760
    %v914 = vsub.f32 %v69, %v913
    %v915 = vand.u32 %v914, 4294901760
    %916 = vmatpush1.msra.mxu0 %v915
    %917 = vmatprep.subr.mxu0 0.0
    %v918 = vand.u32 %v70, 4294901760
    %v919 = vsub.f32 %v70, %v918
    %v920 = vand.u32 %v919, 4294901760
    %921 = vmatpush1.msra.mxu0 %v920
    %922 = vmatprep.subr.mxu0 0.0
    %v923 = vand.u32 %v71, 4294901760
    %v924 = vsub.f32 %v71, %v923
    %v925 = vand.u32 %v924, 4294901760
    %926 = vmatpush1.msra.mxu0 %v925
    %927 = vmatprep.subr.mxu0 0.0
    %v928 = vand.u32 %v72, 4294901760
    %v929 = vsub.f32 %v72, %v928
    %v930 = vand.u32 %v929, 4294901760
    %931 = vmatpush1.msra.mxu0 %v930
    %932 = vmatprep.subr.mxu0 0.0
    %v933 = vand.u32 %v73, 4294901760
    %v934 = vsub.f32 %v73, %v933
    %v935 = vand.u32 %v934, 4294901760
    %936 = vmatpush1.msra.mxu0 %v935
    %937 = vmatprep.subr.mxu0 0.0
    %v938 = vand.u32 %v74, 4294901760
    %v939 = vsub.f32 %v74, %v938
    %v940 = vand.u32 %v939, 4294901760
    %941 = vmatpush1.msra.mxu0 %v940
    %v942 = vand.u32 %v165, 4294901760
    %943 = vmatprep.mubr.f32.mxu0 %v942
    %v944 = vand.u32 %v157, 4294901760
    %945 = vmatmul.mubr.f32.gmra.mrb[0].mxu0 %v944
    %v946 = vpop.f32.mrb[0].mxu0
    %v947 = vadd.f32 %v779, %v946
    %v948 = vpop.f32.mrb[0].mxu0
    %949 = vdwg.mxu0
    %950 = vmatprep.subr.mxu0 0.0
    %v951 = vand.u32 %v43, 4294901760
    %952 = vmatpush1.msra.mxu0 %v951
    %953 = vmatprep.subr.mxu0 0.0
    %v954 = vand.u32 %v44, 4294901760
    %955 = vmatpush1.msra.mxu0 %v954
    %956 = vmatprep.subr.mxu0 0.0
    %v957 = vand.u32 %v45, 4294901760
    %958 = vmatpush1.msra.mxu0 %v957
    %959 = vmatprep.subr.mxu0 0.0
    %v960 = vand.u32 %v46, 4294901760
    %961 = vmatpush1.msra.mxu0 %v960
    %962 = vmatprep.subr.mxu0 0.0
    %v963 = vand.u32 %v47, 4294901760
    %964 = vmatpush1.msra.mxu0 %v963
    %965 = vmatprep.subr.mxu0 0.0
    %v966 = vand.u32 %v48, 4294901760
    %967 = vmatpush1.msra.mxu0 %v966
    %968 = vmatprep.subr.mxu0 0.0
    %v969 = vand.u32 %v49, 4294901760
    %970 = vmatpush1.msra.mxu0 %v969
    %971 = vmatprep.subr.mxu0 0.0
    %v972 = vand.u32 %v50, 4294901760
    %973 = vmatpush1.msra.mxu0 %v972
    %974 = vmatprep.subr.mxu0 0.0
    %v975 = vand.u32 %v51, 4294901760
    %976 = vmatpush1.msra.mxu0 %v975
    %977 = vmatprep.subr.mxu0 0.0
    %v978 = vand.u32 %v52, 4294901760
    %979 = vmatpush1.msra.mxu0 %v978
    %980 = vmatprep.subr.mxu0 0.0
    %v981 = vand.u32 %v53, 4294901760
    %982 = vmatpush1.msra.mxu0 %v981
    %983 = vmatprep.subr.mxu0 0.0
    %v984 = vand.u32 %v54, 4294901760
    %985 = vmatpush1.msra.mxu0 %v984
    %986 = vmatprep.subr.mxu0 0.0
    %v987 = vand.u32 %v55, 4294901760
    %988 = vmatpush1.msra.mxu0 %v987
    %989 = vmatprep.subr.mxu0 0.0
    %v990 = vand.u32 %v56, 4294901760
    %991 = vmatpush1.msra.mxu0 %v990
    %992 = vmatprep.subr.mxu0 0.0
    %v993 = vand.u32 %v57, 4294901760
    %994 = vmatpush1.msra.mxu0 %v993
    %995 = vmatprep.subr.mxu0 0.0
    %v996 = vand.u32 %v58, 4294901760
    %997 = vmatpush1.msra.mxu0 %v996
    %998 = vmatprep.subr.mxu0 0.0
    %v999 = vand.u32 %v59, 4294901760
    %1000 = vmatpush1.msra.mxu0 %v999
    %1001 = vmatprep.subr.mxu0 0.0
    %v1002 = vand.u32 %v60, 4294901760
    %1003 = vmatpush1.msra.mxu0 %v1002
    %1004 = vmatprep.subr.mxu0 0.0
    %v1005 = vand.u32 %v61, 4294901760
    %1006 = vmatpush1.msra.mxu0 %v1005
    %1007 = vmatprep.subr.mxu0 0.0
    %v1008 = vand.u32 %v62, 4294901760
    %1009 = vmatpush1.msra.mxu0 %v1008
    %1010 = vmatprep.subr.mxu0 0.0
    %v1011 = vand.u32 %v63, 4294901760
    %1012 = vmatpush1.msra.mxu0 %v1011
    %1013 = vmatprep.subr.mxu0 0.0
    %v1014 = vand.u32 %v64, 4294901760
    %1015 = vmatpush1.msra.mxu0 %v1014
    %1016 = vmatprep.subr.mxu0 0.0
    %v1017 = vand.u32 %v65, 4294901760
    %1018 = vmatpush1.msra.mxu0 %v1017
    %1019 = vmatprep.subr.mxu0 0.0
    %v1020 = vand.u32 %v66, 4294901760
    %1021 = vmatpush1.msra.mxu0 %v1020
    %1022 = vmatprep.subr.mxu0 0.0
    %v1023 = vand.u32 %v67, 4294901760
    %1024 = vmatpush1.msra.mxu0 %v1023
    %1025 = vmatprep.subr.mxu0 0.0
    %v1026 = vand.u32 %v68, 4294901760
    %1027 = vmatpush1.msra.mxu0 %v1026
    %1028 = vmatprep.subr.mxu0 0.0
    %v1029 = vand.u32 %v69, 4294901760
    %1030 = vmatpush1.msra.mxu0 %v1029
    %1031 = vmatprep.subr.mxu0 0.0
    %v1032 = vand.u32 %v70, 4294901760
    %1033 = vmatpush1.msra.mxu0 %v1032
    %1034 = vmatprep.subr.mxu0 0.0
    %v1035 = vand.u32 %v71, 4294901760
    %1036 = vmatpush1.msra.mxu0 %v1035
    %1037 = vmatprep.subr.mxu0 0.0
    %v1038 = vand.u32 %v72, 4294901760
    %1039 = vmatpush1.msra.mxu0 %v1038
    %1040 = vmatprep.subr.mxu0 0.0
    %v1041 = vand.u32 %v73, 4294901760
    %1042 = vmatpush1.msra.mxu0 %v1041
    %1043 = vmatprep.subr.mxu0 0.0
    %v1044 = vand.u32 %v74, 4294901760
    %1045 = vmatpush1.msra.mxu0 %v1044
    %v1046 = vand.u32 %v165, 4294901760
    %1047 = vmatprep.mubr.f32.mxu0 %v1046
    %v1048 = vand.u32 %v157, 4294901760
    %1049 = vmatmul.mubr.f32.gmra.mrb[0].mxu0 %v1048
    %v1050 = vpop.f32.mrb[0].mxu0
    %v1051 = vadd.f32 %v947, %v1050
    %v1052 = vpop.f32.mrb[0].mxu0
    %1053 = vdwg.mxu0
    %1054 = vmatprep.subr.mxu0 0.0
    %v1055 = vand.u32 %v75, 4294901760
    %1056 = vmatpush1.msra.mxu0 %v1055
    %1057 = vmatprep.subr.mxu0 0.0
    %v1058 = vand.u32 %v76, 4294901760
    %1059 = vmatpush1.msra.mxu0 %v1058
    %1060 = vmatprep.subr.mxu0 0.0
    %v1061 = vand.u32 %v77, 4294901760
    %1062 = vmatpush1.msra.mxu0 %v1061
    %1063 = vmatprep.subr.mxu0 0.0
    %v1064 = vand.u32 %v78, 4294901760
    %1065 = vmatpush1.msra.mxu0 %v1064
    %1066 = vmatprep.subr.mxu0 0.0
    %v1067 = vand.u32 %v79, 4294901760
    %1068 = vmatpush1.msra.mxu0 %v1067
    %1069 = vmatprep.subr.mxu0 0.0
    %v1070 = vand.u32 %v80, 4294901760
    %1071 = vmatpush1.msra.mxu0 %v1070
    %1072 = vmatprep.subr.mxu0 0.0
    %v1073 = vand.u32 %v81, 4294901760
    %1074 = vmatpush1.msra.mxu0 %v1073
    %1075 = vmatprep.subr.mxu0 0.0
    %v1076 = vand.u32 %v82, 4294901760
    %1077 = vmatpush1.msra.mxu0 %v1076
    %1078 = vmatprep.subr.mxu0 0.0
    %v1079 = vand.u32 %v83, 4294901760
    %1080 = vmatpush1.msra.mxu0 %v1079
    %1081 = vmatprep.subr.mxu0 0.0
    %v1082 = vand.u32 %v84, 4294901760
    %1083 = vmatpush1.msra.mxu0 %v1082
    %1084 = vmatprep.subr.mxu0 0.0
    %v1085 = vand.u32 %v85, 4294901760
    %1086 = vmatpush1.msra.mxu0 %v1085
    %1087 = vmatprep.subr.mxu0 0.0
    %v1088 = vand.u32 %v86, 4294901760
    %1089 = vmatpush1.msra.mxu0 %v1088
    %1090 = vmatprep.subr.mxu0 0.0
    %v1091 = vand.u32 %v87, 4294901760
    %1092 = vmatpush1.msra.mxu0 %v1091
    %1093 = vmatprep.subr.mxu0 0.0
    %v1094 = vand.u32 %v88, 4294901760
    %1095 = vmatpush1.msra.mxu0 %v1094
    %1096 = vmatprep.subr.mxu0 0.0
    %v1097 = vand.u32 %v89, 4294901760
    %1098 = vmatpush1.msra.mxu0 %v1097
    %1099 = vmatprep.subr.mxu0 0.0
    %v1100 = vand.u32 %v90, 4294901760
    %1101 = vmatpush1.msra.mxu0 %v1100
    %1102 = vmatprep.subr.mxu0 0.0
    %v1103 = vand.u32 %v91, 4294901760
    %1104 = vmatpush1.msra.mxu0 %v1103
    %1105 = vmatprep.subr.mxu0 0.0
    %v1106 = vand.u32 %v92, 4294901760
    %1107 = vmatpush1.msra.mxu0 %v1106
    %1108 = vmatprep.subr.mxu0 0.0
    %v1109 = vand.u32 %v93, 4294901760
    %1110 = vmatpush1.msra.mxu0 %v1109
    %1111 = vmatprep.subr.mxu0 0.0
    %v1112 = vand.u32 %v94, 4294901760
    %1113 = vmatpush1.msra.mxu0 %v1112
    %1114 = vmatprep.subr.mxu0 0.0
    %v1115 = vand.u32 %v95, 4294901760
    %1116 = vmatpush1.msra.mxu0 %v1115
    %1117 = vmatprep.subr.mxu0 0.0
    %v1118 = vand.u32 %v96, 4294901760
    %1119 = vmatpush1.msra.mxu0 %v1118
    %1120 = vmatprep.subr.mxu0 0.0
    %v1121 = vand.u32 %v97, 4294901760
    %1122 = vmatpush1.msra.mxu0 %v1121
    %1123 = vmatprep.subr.mxu0 0.0
    %v1124 = vand.u32 %v98, 4294901760
    %1125 = vmatpush1.msra.mxu0 %v1124
    %1126 = vmatprep.subr.mxu0 0.0
    %v1127 = vand.u32 %v99, 4294901760
    %1128 = vmatpush1.msra.mxu0 %v1127
    %1129 = vmatprep.subr.mxu0 0.0
    %v1130 = vand.u32 %v100, 4294901760
    %1131 = vmatpush1.msra.mxu0 %v1130
    %1132 = vmatprep.subr.mxu0 0.0
    %v1133 = vand.u32 %v101, 4294901760
    %1134 = vmatpush1.msra.mxu0 %v1133
    %1135 = vmatprep.subr.mxu0 0.0
    %v1136 = vand.u32 %v102, 4294901760
    %1137 = vmatpush1.msra.mxu0 %v1136
    %1138 = vmatprep.subr.mxu0 0.0
    %v1139 = vand.u32 %v103, 4294901760
    %1140 = vmatpush1.msra.mxu0 %v1139
    %1141 = vmatprep.subr.mxu0 0.0
    %v1142 = vand.u32 %v104, 4294901760
    %1143 = vmatpush1.msra.mxu0 %v1142
    %1144 = vmatprep.subr.mxu0 0.0
    %v1145 = vand.u32 %v105, 4294901760
    %1146 = vmatpush1.msra.mxu0 %v1145
    %1147 = vmatprep.subr.mxu0 0.0
    %v1148 = vand.u32 %v106, 4294901760
    %1149 = vmatpush1.msra.mxu0 %v1148
    %v1150 = vand.u32 %v166, 4294901760
    %v1151 = vsub.f32 %v166, %v1150
    %v1152 = vand.u32 %v1151, 4294901760
    %v1153 = vsub.f32 %v1151, %v1152
    %v1154 = vand.u32 %v1153, 4294901760
    %1155 = vmatprep.mubr.f32.mxu0 %v1154
    %v1156 = vand.u32 %v164, 4294901760
    %v1157 = vsub.f32 %v164, %v1156
    %v1158 = vand.u32 %v1157, 4294901760
    %v1159 = vsub.f32 %v1157, %v1158
    %v1160 = vand.u32 %v1159, 4294901760
    %1161 = vmatmul.mubr.f32.gmra.mrb[0].mxu0 %v1160
    %v1162 = vpop.f32.mrb[0].mxu0
    %v1163 = vadd.f32 %v1051, %v1162
    %v1164 = vpop.f32.mrb[0].mxu0
    %1165 = vdwg.mxu0
    %1166 = vmatprep.subr.mxu0 0.0
    %v1167 = vand.u32 %v75, 4294901760
    %v1168 = vsub.f32 %v75, %v1167
    %v1169 = vand.u32 %v1168, 4294901760
    %v1170 = vsub.f32 %v1168, %v1169
    %v1171 = vand.u32 %v1170, 4294901760
    %1172 = vmatpush1.msra.mxu0 %v1171
    %1173 = vmatprep.subr.mxu0 0.0
    %v1174 = vand.u32 %v76, 4294901760
    %v1175 = vsub.f32 %v76, %v1174
    %v1176 = vand.u32 %v1175, 4294901760
    %v1177 = vsub.f32 %v1175, %v1176
    %v1178 = vand.u32 %v1177, 4294901760
    %1179 = vmatpush1.msra.mxu0 %v1178
    %1180 = vmatprep.subr.mxu0 0.0
    %v1181 = vand.u32 %v77, 4294901760
    %v1182 = vsub.f32 %v77, %v1181
    %v1183 = vand.u32 %v1182, 4294901760
    %v1184 = vsub.f32 %v1182, %v1183
    %v1185 = vand.u32 %v1184, 4294901760
    %1186 = vmatpush1.msra.mxu0 %v1185
    %1187 = vmatprep.subr.mxu0 0.0
    %v1188 = vand.u32 %v78, 4294901760
    %v1189 = vsub.f32 %v78, %v1188
    %v1190 = vand.u32 %v1189, 4294901760
    %v1191 = vsub.f32 %v1189, %v1190
    %v1192 = vand.u32 %v1191, 4294901760
    %1193 = vmatpush1.msra.mxu0 %v1192
    %1194 = vmatprep.subr.mxu0 0.0
    %v1195 = vand.u32 %v79, 4294901760
    %v1196 = vsub.f32 %v79, %v1195
    %v1197 = vand.u32 %v1196, 4294901760
    %v1198 = vsub.f32 %v1196, %v1197
    %v1199 = vand.u32 %v1198, 4294901760
    %1200 = vmatpush1.msra.mxu0 %v1199
    %1201 = vmatprep.subr.mxu0 0.0
    %v1202 = vand.u32 %v80, 4294901760
    %v1203 = vsub.f32 %v80, %v1202
    %v1204 = vand.u32 %v1203, 4294901760
    %v1205 = vsub.f32 %v1203, %v1204
    %v1206 = vand.u32 %v1205, 4294901760
    %1207 = vmatpush1.msra.mxu0 %v1206
    %1208 = vmatprep.subr.mxu0 0.0
    %v1209 = vand.u32 %v81, 4294901760
    %v1210 = vsub.f32 %v81, %v1209
    %v1211 = vand.u32 %v1210, 4294901760
    %v1212 = vsub.f32 %v1210, %v1211
    %v1213 = vand.u32 %v1212, 4294901760
    %1214 = vmatpush1.msra.mxu0 %v1213
    %1215 = vmatprep.subr.mxu0 0.0
    %v1216 = vand.u32 %v82, 4294901760
    %v1217 = vsub.f32 %v82, %v1216
    %v1218 = vand.u32 %v1217, 4294901760
    %v1219 = vsub.f32 %v1217, %v1218
    %v1220 = vand.u32 %v1219, 4294901760
    %1221 = vmatpush1.msra.mxu0 %v1220
    %1222 = vmatprep.subr.mxu0 0.0
    %v1223 = vand.u32 %v83, 4294901760
    %v1224 = vsub.f32 %v83, %v1223
    %v1225 = vand.u32 %v1224, 4294901760
    %v1226 = vsub.f32 %v1224, %v1225
    %v1227 = vand.u32 %v1226, 4294901760
    %1228 = vmatpush1.msra.mxu0 %v1227
    %1229 = vmatprep.subr.mxu0 0.0
    %v1230 = vand.u32 %v84, 4294901760
    %v1231 = vsub.f32 %v84, %v1230
    %v1232 = vand.u32 %v1231, 4294901760
    %v1233 = vsub.f32 %v1231, %v1232
    %v1234 = vand.u32 %v1233, 4294901760
    %1235 = vmatpush1.msra.mxu0 %v1234
    %1236 = vmatprep.subr.mxu0 0.0
    %v1237 = vand.u32 %v85, 4294901760
    %v1238 = vsub.f32 %v85, %v1237
    %v1239 = vand.u32 %v1238, 4294901760
    %v1240 = vsub.f32 %v1238, %v1239
    %v1241 = vand.u32 %v1240, 4294901760
    %1242 = vmatpush1.msra.mxu0 %v1241
    %1243 = vmatprep.subr.mxu0 0.0
    %v1244 = vand.u32 %v86, 4294901760
    %v1245 = vsub.f32 %v86, %v1244
    %v1246 = vand.u32 %v1245, 4294901760
    %v1247 = vsub.f32 %v1245, %v1246
    %v1248 = vand.u32 %v1247, 4294901760
    %1249 = vmatpush1.msra.mxu0 %v1248
    %1250 = vmatprep.subr.mxu0 0.0
    %v1251 = vand.u32 %v87, 4294901760
    %v1252 = vsub.f32 %v87, %v1251
    %v1253 = vand.u32 %v1252, 4294901760
    %v1254 = vsub.f32 %v1252, %v1253
    %v1255 = vand.u32 %v1254, 4294901760
    %1256 = vmatpush1.msra.mxu0 %v1255
    %1257 = vmatprep.subr.mxu0 0.0
    %v1258 = vand.u32 %v88, 4294901760
    %v1259 = vsub.f32 %v88, %v1258
    %v1260 = vand.u32 %v1259, 4294901760
    %v1261 = vsub.f32 %v1259, %v1260
    %v1262 = vand.u32 %v1261, 4294901760
    %1263 = vmatpush1.msra.mxu0 %v1262
    %1264 = vmatprep.subr.mxu0 0.0
    %v1265 = vand.u32 %v89, 4294901760
    %v1266 = vsub.f32 %v89, %v1265
    %v1267 = vand.u32 %v1266, 4294901760
    %v1268 = vsub.f32 %v1266, %v1267
    %v1269 = vand.u32 %v1268, 4294901760
    %1270 = vmatpush1.msra.mxu0 %v1269
    %1271 = vmatprep.subr.mxu0 0.0
    %v1272 = vand.u32 %v90, 4294901760
    %v1273 = vsub.f32 %v90, %v1272
    %v1274 = vand.u32 %v1273, 4294901760
    %v1275 = vsub.f32 %v1273, %v1274
    %v1276 = vand.u32 %v1275, 4294901760
    %1277 = vmatpush1.msra.mxu0 %v1276
    %1278 = vmatprep.subr.mxu0 0.0
    %v1279 = vand.u32 %v91, 4294901760
    %v1280 = vsub.f32 %v91, %v1279
    %v1281 = vand.u32 %v1280, 4294901760
    %v1282 = vsub.f32 %v1280, %v1281
    %v1283 = vand.u32 %v1282, 4294901760
    %1284 = vmatpush1.msra.mxu0 %v1283
    %1285 = vmatprep.subr.mxu0 0.0
    %v1286 = vand.u32 %v92, 4294901760
    %v1287 = vsub.f32 %v92, %v1286
    %v1288 = vand.u32 %v1287, 4294901760
    %v1289 = vsub.f32 %v1287, %v1288
    %v1290 = vand.u32 %v1289, 4294901760
    %1291 = vmatpush1.msra.mxu0 %v1290
    %1292 = vmatprep.subr.mxu0 0.0
    %v1293 = vand.u32 %v93, 4294901760
    %v1294 = vsub.f32 %v93, %v1293
    %v1295 = vand.u32 %v1294, 4294901760
    %v1296 = vsub.f32 %v1294, %v1295
    %v1297 = vand.u32 %v1296, 4294901760
    %1298 = vmatpush1.msra.mxu0 %v1297
    %1299 = vmatprep.subr.mxu0 0.0
    %v1300 = vand.u32 %v94, 4294901760
    %v1301 = vsub.f32 %v94, %v1300
    %v1302 = vand.u32 %v1301, 4294901760
    %v1303 = vsub.f32 %v1301, %v1302
    %v1304 = vand.u32 %v1303, 4294901760
    %1305 = vmatpush1.msra.mxu0 %v1304
    %1306 = vmatprep.subr.mxu0 0.0
    %v1307 = vand.u32 %v95, 4294901760
    %v1308 = vsub.f32 %v95, %v1307
    %v1309 = vand.u32 %v1308, 4294901760
    %v1310 = vsub.f32 %v1308, %v1309
    %v1311 = vand.u32 %v1310, 4294901760
    %1312 = vmatpush1.msra.mxu0 %v1311
    %1313 = vmatprep.subr.mxu0 0.0
    %v1314 = vand.u32 %v96, 4294901760
    %v1315 = vsub.f32 %v96, %v1314
    %v1316 = vand.u32 %v1315, 4294901760
    %v1317 = vsub.f32 %v1315, %v1316
    %v1318 = vand.u32 %v1317, 4294901760
    %1319 = vmatpush1.msra.mxu0 %v1318
    %1320 = vmatprep.subr.mxu0 0.0
    %v1321 = vand.u32 %v97, 4294901760
    %v1322 = vsub.f32 %v97, %v1321
    %v1323 = vand.u32 %v1322, 4294901760
    %v1324 = vsub.f32 %v1322, %v1323
    %v1325 = vand.u32 %v1324, 4294901760
    %1326 = vmatpush1.msra.mxu0 %v1325
    %1327 = vmatprep.subr.mxu0 0.0
    %v1328 = vand.u32 %v98, 4294901760
    %v1329 = vsub.f32 %v98, %v1328
    %v1330 = vand.u32 %v1329, 4294901760
    %v1331 = vsub.f32 %v1329, %v1330
    %v1332 = vand.u32 %v1331, 4294901760
    %1333 = vmatpush1.msra.mxu0 %v1332
    %1334 = vmatprep.subr.mxu0 0.0
    %v1335 = vand.u32 %v99, 4294901760
    %v1336 = vsub.f32 %v99, %v1335
    %v1337 = vand.u32 %v1336, 4294901760
    %v1338 = vsub.f32 %v1336, %v1337
    %v1339 = vand.u32 %v1338, 4294901760
    %1340 = vmatpush1.msra.mxu0 %v1339
    %1341 = vmatprep.subr.mxu0 0.0
    %v1342 = vand.u32 %v100, 4294901760
    %v1343 = vsub.f32 %v100, %v1342
    %v1344 = vand.u32 %v1343, 4294901760
    %v1345 = vsub.f32 %v1343, %v1344
    %v1346 = vand.u32 %v1345, 4294901760
    %1347 = vmatpush1.msra.mxu0 %v1346
    %1348 = vmatprep.subr.mxu0 0.0
    %v1349 = vand.u32 %v101, 4294901760
    %v1350 = vsub.f32 %v101, %v1349
    %v1351 = vand.u32 %v1350, 4294901760
    %v1352 = vsub.f32 %v1350, %v1351
    %v1353 = vand.u32 %v1352, 4294901760
    %1354 = vmatpush1.msra.mxu0 %v1353
    %1355 = vmatprep.subr.mxu0 0.0
    %v1356 = vand.u32 %v102, 4294901760
    %v1357 = vsub.f32 %v102, %v1356
    %v1358 = vand.u32 %v1357, 4294901760
    %v1359 = vsub.f32 %v1357, %v1358
    %v1360 = vand.u32 %v1359, 4294901760
    %1361 = vmatpush1.msra.mxu0 %v1360
    %1362 = vmatprep.subr.mxu0 0.0
    %v1363 = vand.u32 %v103, 4294901760
    %v1364 = vsub.f32 %v103, %v1363
    %v1365 = vand.u32 %v1364, 4294901760
    %v1366 = vsub.f32 %v1364, %v1365
    %v1367 = vand.u32 %v1366, 4294901760
    %1368 = vmatpush1.msra.mxu0 %v1367
    %1369 = vmatprep.subr.mxu0 0.0
    %v1370 = vand.u32 %v104, 4294901760
    %v1371 = vsub.f32 %v104, %v1370
    %v1372 = vand.u32 %v1371, 4294901760
    %v1373 = vsub.f32 %v1371, %v1372
    %v1374 = vand.u32 %v1373, 4294901760
    %1375 = vmatpush1.msra.mxu0 %v1374
    %1376 = vmatprep.subr.mxu0 0.0
    %v1377 = vand.u32 %v105, 4294901760
    %v1378 = vsub.f32 %v105, %v1377
    %v1379 = vand.u32 %v1378, 4294901760
    %v1380 = vsub.f32 %v1378, %v1379
    %v1381 = vand.u32 %v1380, 4294901760
    %1382 = vmatpush1.msra.mxu0 %v1381
    %1383 = vmatprep.subr.mxu0 0.0
    %v1384 = vand.u32 %v106, 4294901760
    %v1385 = vsub.f32 %v106, %v1384
    %v1386 = vand.u32 %v1385, 4294901760
    %v1387 = vsub.f32 %v1385, %v1386
    %v1388 = vand.u32 %v1387, 4294901760
    %1389 = vmatpush1.msra.mxu0 %v1388
    %v1390 = vand.u32 %v166, 4294901760
    %1391 = vmatprep.mubr.f32.mxu0 %v1390
    %v1392 = vand.u32 %v164, 4294901760
    %1393 = vmatmul.mubr.f32.gmra.mrb[0].mxu0 %v1392
    %v1394 = vpop.f32.mrb[0].mxu0
    %v1395 = vadd.f32 %v1163, %v1394
    %v1396 = vpop.f32.mrb[0].mxu0
    %1397 = vdwg.mxu0
    %1398 = vmatprep.subr.mxu0 0.0
    %v1399 = vand.u32 %v75, 4294901760
    %v1400 = vsub.f32 %v75, %v1399
    %1401 = vmatpush1.msra.mxu0 %v1400
    %1402 = vmatprep.subr.mxu0 0.0
    %v1403 = vand.u32 %v76, 4294901760
    %v1404 = vsub.f32 %v76, %v1403
    %1405 = vmatpush1.msra.mxu0 %v1404
    %1406 = vmatprep.subr.mxu0 0.0
    %v1407 = vand.u32 %v77, 4294901760
    %v1408 = vsub.f32 %v77, %v1407
    %1409 = vmatpush1.msra.mxu0 %v1408
    %1410 = vmatprep.subr.mxu0 0.0
    %v1411 = vand.u32 %v78, 4294901760
    %v1412 = vsub.f32 %v78, %v1411
    %1413 = vmatpush1.msra.mxu0 %v1412
    %1414 = vmatprep.subr.mxu0 0.0
    %v1415 = vand.u32 %v79, 4294901760
    %v1416 = vsub.f32 %v79, %v1415
    %1417 = vmatpush1.msra.mxu0 %v1416
    %1418 = vmatprep.subr.mxu0 0.0
    %v1419 = vand.u32 %v80, 4294901760
    %v1420 = vsub.f32 %v80, %v1419
    %1421 = vmatpush1.msra.mxu0 %v1420
    %1422 = vmatprep.subr.mxu0 0.0
    %v1423 = vand.u32 %v81, 4294901760
    %v1424 = vsub.f32 %v81, %v1423
    %1425 = vmatpush1.msra.mxu0 %v1424
    %1426 = vmatprep.subr.mxu0 0.0
    %v1427 = vand.u32 %v82, 4294901760
    %v1428 = vsub.f32 %v82, %v1427
    %1429 = vmatpush1.msra.mxu0 %v1428
    %1430 = vmatprep.subr.mxu0 0.0
    %v1431 = vand.u32 %v83, 4294901760
    %v1432 = vsub.f32 %v83, %v1431
    %1433 = vmatpush1.msra.mxu0 %v1432
    %1434 = vmatprep.subr.mxu0 0.0
    %v1435 = vand.u32 %v84, 4294901760
    %v1436 = vsub.f32 %v84, %v1435
    %1437 = vmatpush1.msra.mxu0 %v1436
    %1438 = vmatprep.subr.mxu0 0.0
    %v1439 = vand.u32 %v85, 4294901760
    %v1440 = vsub.f32 %v85, %v1439
    %1441 = vmatpush1.msra.mxu0 %v1440
    %1442 = vmatprep.subr.mxu0 0.0
    %v1443 = vand.u32 %v86, 4294901760
    %v1444 = vsub.f32 %v86, %v1443
    %1445 = vmatpush1.msra.mxu0 %v1444
    %1446 = vmatprep.subr.mxu0 0.0
    %v1447 = vand.u32 %v87, 4294901760
    %v1448 = vsub.f32 %v87, %v1447
    %1449 = vmatpush1.msra.mxu0 %v1448
    %1450 = vmatprep.subr.mxu0 0.0
    %v1451 = vand.u32 %v88, 4294901760
    %v1452 = vsub.f32 %v88, %v1451
    %1453 = vmatpush1.msra.mxu0 %v1452
    %1454 = vmatprep.subr.mxu0 0.0
    %v1455 = vand.u32 %v89, 4294901760
    %v1456 = vsub.f32 %v89, %v1455
    %1457 = vmatpush1.msra.mxu0 %v1456
    %1458 = vmatprep.subr.mxu0 0.0
    %v1459 = vand.u32 %v90, 4294901760
    %v1460 = vsub.f32 %v90, %v1459
    %1461 = vmatpush1.msra.mxu0 %v1460
    %1462 = vmatprep.subr.mxu0 0.0
    %v1463 = vand.u32 %v91, 4294901760
    %v1464 = vsub.f32 %v91, %v1463
    %1465 = vmatpush1.msra.mxu0 %v1464
    %1466 = vmatprep.subr.mxu0 0.0
    %v1467 = vand.u32 %v92, 4294901760
    %v1468 = vsub.f32 %v92, %v1467
    %1469 = vmatpush1.msra.mxu0 %v1468
    %1470 = vmatprep.subr.mxu0 0.0
    %v1471 = vand.u32 %v93, 4294901760
    %v1472 = vsub.f32 %v93, %v1471
    %1473 = vmatpush1.msra.mxu0 %v1472
    %1474 = vmatprep.subr.mxu0 0.0
    %v1475 = vand.u32 %v94, 4294901760
    %v1476 = vsub.f32 %v94, %v1475
    %1477 = vmatpush1.msra.mxu0 %v1476
    %1478 = vmatprep.subr.mxu0 0.0
    %v1479 = vand.u32 %v95, 4294901760
    %v1480 = vsub.f32 %v95, %v1479
    %1481 = vmatpush1.msra.mxu0 %v1480
    %1482 = vmatprep.subr.mxu0 0.0
    %v1483 = vand.u32 %v96, 4294901760
    %v1484 = vsub.f32 %v96, %v1483
    %1485 = vmatpush1.msra.mxu0 %v1484
    %1486 = vmatprep.subr.mxu0 0.0
    %v1487 = vand.u32 %v97, 4294901760
    %v1488 = vsub.f32 %v97, %v1487
    %1489 = vmatpush1.msra.mxu0 %v1488
    %1490 = vmatprep.subr.mxu0 0.0
    %v1491 = vand.u32 %v98, 4294901760
    %v1492 = vsub.f32 %v98, %v1491
    %1493 = vmatpush1.msra.mxu0 %v1492
    %1494 = vmatprep.subr.mxu0 0.0
    %v1495 = vand.u32 %v99, 4294901760
    %v1496 = vsub.f32 %v99, %v1495
    %1497 = vmatpush1.msra.mxu0 %v1496
    %1498 = vmatprep.subr.mxu0 0.0
    %v1499 = vand.u32 %v100, 4294901760
    %v1500 = vsub.f32 %v100, %v1499
    %1501 = vmatpush1.msra.mxu0 %v1500
    %1502 = vmatprep.subr.mxu0 0.0
    %v1503 = vand.u32 %v101, 4294901760
    %v1504 = vsub.f32 %v101, %v1503
    %1505 = vmatpush1.msra.mxu0 %v1504
    %1506 = vmatprep.subr.mxu0 0.0
    %v1507 = vand.u32 %v102, 4294901760
    %v1508 = vsub.f32 %v102, %v1507
    %1509 = vmatpush1.msra.mxu0 %v1508
    %1510 = vmatprep.subr.mxu0 0.0
    %v1511 = vand.u32 %v103, 4294901760
    %v1512 = vsub.f32 %v103, %v1511
    %1513 = vmatpush1.msra.mxu0 %v1512
    %1514 = vmatprep.subr.mxu0 0.0
    %v1515 = vand.u32 %v104, 4294901760
    %v1516 = vsub.f32 %v104, %v1515
    %1517 = vmatpush1.msra.mxu0 %v1516
    %1518 = vmatprep.subr.mxu0 0.0
    %v1519 = vand.u32 %v105, 4294901760
    %v1520 = vsub.f32 %v105, %v1519
    %1521 = vmatpush1.msra.mxu0 %v1520
    %1522 = vmatprep.subr.mxu0 0.0
    %v1523 = vand.u32 %v106, 4294901760
    %v1524 = vsub.f32 %v106, %v1523
    %1525 = vmatpush1.msra.mxu0 %v1524
    %v1526 = vand.u32 %v166, 4294901760
    %v1527 = vsub.f32 %v166, %v1526
    %1528 = vmatprep.mubr.f32.mxu0 %v1527
    %v1529 = vand.u32 %v164, 4294901760
    %v1530 = vsub.f32 %v164, %v1529
    %1531 = vmatmul.mubr.f32.gmra.mrb[0].mxu0 %v1530
    %v1532 = vpop.f32.mrb[0].mxu0
    %v1533 = vadd.f32 %v1395, %v1532
    %v1534 = vpop.f32.mrb[0].mxu0
    %1535 = vdwg.mxu0
    %1536 = vmatprep.subr.mxu0 0.0
    %v1537 = vand.u32 %v75, 4294901760
    %1538 = vmatpush1.msra.mxu0 %v1537
    %1539 = vmatprep.subr.mxu0 0.0
    %v1540 = vand.u32 %v76, 4294901760
    %1541 = vmatpush1.msra.mxu0 %v1540
    %1542 = vmatprep.subr.mxu0 0.0
    %v1543 = vand.u32 %v77, 4294901760
    %1544 = vmatpush1.msra.mxu0 %v1543
    %1545 = vmatprep.subr.mxu0 0.0
    %v1546 = vand.u32 %v78, 4294901760
    %1547 = vmatpush1.msra.mxu0 %v1546
    %1548 = vmatprep.subr.mxu0 0.0
    %v1549 = vand.u32 %v79, 4294901760
    %1550 = vmatpush1.msra.mxu0 %v1549
    %1551 = vmatprep.subr.mxu0 0.0
    %v1552 = vand.u32 %v80, 4294901760
    %1553 = vmatpush1.msra.mxu0 %v1552
    %1554 = vmatprep.subr.mxu0 0.0
    %v1555 = vand.u32 %v81, 4294901760
    %1556 = vmatpush1.msra.mxu0 %v1555
    %1557 = vmatprep.subr.mxu0 0.0
    %v1558 = vand.u32 %v82, 4294901760
    %1559 = vmatpush1.msra.mxu0 %v1558
    %1560 = vmatprep.subr.mxu0 0.0
    %v1561 = vand.u32 %v83, 4294901760
    %1562 = vmatpush1.msra.mxu0 %v1561
    %1563 = vmatprep.subr.mxu0 0.0
    %v1564 = vand.u32 %v84, 4294901760
    %1565 = vmatpush1.msra.mxu0 %v1564
    %1566 = vmatprep.subr.mxu0 0.0
    %v1567 = vand.u32 %v85, 4294901760
    %1568 = vmatpush1.msra.mxu0 %v1567
    %1569 = vmatprep.subr.mxu0 0.0
    %v1570 = vand.u32 %v86, 4294901760
    %1571 = vmatpush1.msra.mxu0 %v1570
    %1572 = vmatprep.subr.mxu0 0.0
    %v1573 = vand.u32 %v87, 4294901760
    %1574 = vmatpush1.msra.mxu0 %v1573
    %1575 = vmatprep.subr.mxu0 0.0
    %v1576 = vand.u32 %v88, 4294901760
    %1577 = vmatpush1.msra.mxu0 %v1576
    %1578 = vmatprep.subr.mxu0 0.0
    %v1579 = vand.u32 %v89, 4294901760
    %1580 = vmatpush1.msra.mxu0 %v1579
    %1581 = vmatprep.subr.mxu0 0.0
    %v1582 = vand.u32 %v90, 4294901760
    %1583 = vmatpush1.msra.mxu0 %v1582
    %1584 = vmatprep.subr.mxu0 0.0
    %v1585 = vand.u32 %v91, 4294901760
    %1586 = vmatpush1.msra.mxu0 %v1585
    %1587 = vmatprep.subr.mxu0 0.0
    %v1588 = vand.u32 %v92, 4294901760
    %1589 = vmatpush1.msra.mxu0 %v1588
    %1590 = vmatprep.subr.mxu0 0.0
    %v1591 = vand.u32 %v93, 4294901760
    %1592 = vmatpush1.msra.mxu0 %v1591
    %1593 = vmatprep.subr.mxu0 0.0
    %v1594 = vand.u32 %v94, 4294901760
    %1595 = vmatpush1.msra.mxu0 %v1594
    %1596 = vmatprep.subr.mxu0 0.0
    %v1597 = vand.u32 %v95, 4294901760
    %1598 = vmatpush1.msra.mxu0 %v1597
    %1599 = vmatprep.subr.mxu0 0.0
    %v1600 = vand.u32 %v96, 4294901760
    %1601 = vmatpush1.msra.mxu0 %v1600
    %1602 = vmatprep.subr.mxu0 0.0
    %v1603 = vand.u32 %v97, 4294901760
    %1604 = vmatpush1.msra.mxu0 %v1603
    %1605 = vmatprep.subr.mxu0 0.0
    %v1606 = vand.u32 %v98, 4294901760
    %1607 = vmatpush1.msra.mxu0 %v1606
    %1608 = vmatprep.subr.mxu0 0.0
    %v1609 = vand.u32 %v99, 4294901760
    %1610 = vmatpush1.msra.mxu0 %v1609
    %1611 = vmatprep.subr.mxu0 0.0
    %v1612 = vand.u32 %v100, 4294901760
    %1613 = vmatpush1.msra.mxu0 %v1612
    %1614 = vmatprep.subr.mxu0 0.0
    %v1615 = vand.u32 %v101, 4294901760
    %1616 = vmatpush1.msra.mxu0 %v1615
    %1617 = vmatprep.subr.mxu0 0.0
    %v1618 = vand.u32 %v102, 4294901760
    %1619 = vmatpush1.msra.mxu0 %v1618
    %1620 = vmatprep.subr.mxu0 0.0
    %v1621 = vand.u32 %v103, 4294901760
    %1622 = vmatpush1.msra.mxu0 %v1621
    %1623 = vmatprep.subr.mxu0 0.0
    %v1624 = vand.u32 %v104, 4294901760
    %1625 = vmatpush1.msra.mxu0 %v1624
    %1626 = vmatprep.subr.mxu0 0.0
    %v1627 = vand.u32 %v105, 4294901760
    %1628 = vmatpush1.msra.mxu0 %v1627
    %1629 = vmatprep.subr.mxu0 0.0
    %v1630 = vand.u32 %v106, 4294901760
    %1631 = vmatpush1.msra.mxu0 %v1630
    %v1632 = vand.u32 %v166, 4294901760
    %v1633 = vsub.f32 %v166, %v1632
    %v1634 = vand.u32 %v1633, 4294901760
    %1635 = vmatprep.mubr.f32.mxu0 %v1634
    %v1636 = vand.u32 %v164, 4294901760
    %v1637 = vsub.f32 %v164, %v1636
    %v1638 = vand.u32 %v1637, 4294901760
    %1639 = vmatmul.mubr.f32.gmra.mrb[0].mxu0 %v1638
    %v1640 = vpop.f32.mrb[0].mxu0
    %v1641 = vadd.f32 %v1533, %v1640
    %v1642 = vpop.f32.mrb[0].mxu0
    %1643 = vdwg.mxu0
    %1644 = vmatprep.subr.mxu0 0.0
    %v1645 = vand.u32 %v75, 4294901760
    %v1646 = vsub.f32 %v75, %v1645
    %v1647 = vand.u32 %v1646, 4294901760
    %1648 = vmatpush1.msra.mxu0 %v1647
    %1649 = vmatprep.subr.mxu0 0.0
    %v1650 = vand.u32 %v76, 4294901760
    %v1651 = vsub.f32 %v76, %v1650
    %v1652 = vand.u32 %v1651, 4294901760
    %1653 = vmatpush1.msra.mxu0 %v1652
    %1654 = vmatprep.subr.mxu0 0.0
    %v1655 = vand.u32 %v77, 4294901760
    %v1656 = vsub.f32 %v77, %v1655
    %v1657 = vand.u32 %v1656, 4294901760
    %1658 = vmatpush1.msra.mxu0 %v1657
    %1659 = vmatprep.subr.mxu0 0.0
    %v1660 = vand.u32 %v78, 4294901760
    %v1661 = vsub.f32 %v78, %v1660
    %v1662 = vand.u32 %v1661, 4294901760
    %1663 = vmatpush1.msra.mxu0 %v1662
    %1664 = vmatprep.subr.mxu0 0.0
    %v1665 = vand.u32 %v79, 4294901760
    %v1666 = vsub.f32 %v79, %v1665
    %v1667 = vand.u32 %v1666, 4294901760
    %1668 = vmatpush1.msra.mxu0 %v1667
    %1669 = vmatprep.subr.mxu0 0.0
    %v1670 = vand.u32 %v80, 4294901760
    %v1671 = vsub.f32 %v80, %v1670
    %v1672 = vand.u32 %v1671, 4294901760
    %1673 = vmatpush1.msra.mxu0 %v1672
    %1674 = vmatprep.subr.mxu0 0.0
    %v1675 = vand.u32 %v81, 4294901760
    %v1676 = vsub.f32 %v81, %v1675
    %v1677 = vand.u32 %v1676, 4294901760
    %1678 = vmatpush1.msra.mxu0 %v1677
    %1679 = vmatprep.subr.mxu0 0.0
    %v1680 = vand.u32 %v82, 4294901760
    %v1681 = vsub.f32 %v82, %v1680
    %v1682 = vand.u32 %v1681, 4294901760
    %1683 = vmatpush1.msra.mxu0 %v1682
    %1684 = vmatprep.subr.mxu0 0.0
    %v1685 = vand.u32 %v83, 4294901760
    %v1686 = vsub.f32 %v83, %v1685
    %v1687 = vand.u32 %v1686, 4294901760
    %1688 = vmatpush1.msra.mxu0 %v1687
    %1689 = vmatprep.subr.mxu0 0.0
    %v1690 = vand.u32 %v84, 4294901760
    %v1691 = vsub.f32 %v84, %v1690
    %v1692 = vand.u32 %v1691, 4294901760
    %1693 = vmatpush1.msra.mxu0 %v1692
    %1694 = vmatprep.subr.mxu0 0.0
    %v1695 = vand.u32 %v85, 4294901760
    %v1696 = vsub.f32 %v85, %v1695
    %v1697 = vand.u32 %v1696, 4294901760
    %1698 = vmatpush1.msra.mxu0 %v1697
    %1699 = vmatprep.subr.mxu0 0.0
    %v1700 = vand.u32 %v86, 4294901760
    %v1701 = vsub.f32 %v86, %v1700
    %v1702 = vand.u32 %v1701, 4294901760
    %1703 = vmatpush1.msra.mxu0 %v1702
    %1704 = vmatprep.subr.mxu0 0.0
    %v1705 = vand.u32 %v87, 4294901760
    %v1706 = vsub.f32 %v87, %v1705
    %v1707 = vand.u32 %v1706, 4294901760
    %1708 = vmatpush1.msra.mxu0 %v1707
    %1709 = vmatprep.subr.mxu0 0.0
    %v1710 = vand.u32 %v88, 4294901760
    %v1711 = vsub.f32 %v88, %v1710
    %v1712 = vand.u32 %v1711, 4294901760
    %1713 = vmatpush1.msra.mxu0 %v1712
    %1714 = vmatprep.subr.mxu0 0.0
    %v1715 = vand.u32 %v89, 4294901760
    %v1716 = vsub.f32 %v89, %v1715
    %v1717 = vand.u32 %v1716, 4294901760
    %1718 = vmatpush1.msra.mxu0 %v1717
    %1719 = vmatprep.subr.mxu0 0.0
    %v1720 = vand.u32 %v90, 4294901760
    %v1721 = vsub.f32 %v90, %v1720
    %v1722 = vand.u32 %v1721, 4294901760
    %1723 = vmatpush1.msra.mxu0 %v1722
    %1724 = vmatprep.subr.mxu0 0.0
    %v1725 = vand.u32 %v91, 4294901760
    %v1726 = vsub.f32 %v91, %v1725
    %v1727 = vand.u32 %v1726, 4294901760
    %1728 = vmatpush1.msra.mxu0 %v1727
    %1729 = vmatprep.subr.mxu0 0.0
    %v1730 = vand.u32 %v92, 4294901760
    %v1731 = vsub.f32 %v92, %v1730
    %v1732 = vand.u32 %v1731, 4294901760
    %1733 = vmatpush1.msra.mxu0 %v1732
    %1734 = vmatprep.subr.mxu0 0.0
    %v1735 = vand.u32 %v93, 4294901760
    %v1736 = vsub.f32 %v93, %v1735
    %v1737 = vand.u32 %v1736, 4294901760
    %1738 = vmatpush1.msra.mxu0 %v1737
    %1739 = vmatprep.subr.mxu0 0.0
    %v1740 = vand.u32 %v94, 4294901760
    %v1741 = vsub.f32 %v94, %v1740
    %v1742 = vand.u32 %v1741, 4294901760
    %1743 = vmatpush1.msra.mxu0 %v1742
    %1744 = vmatprep.subr.mxu0 0.0
    %v1745 = vand.u32 %v95, 4294901760
    %v1746 = vsub.f32 %v95, %v1745
    %v1747 = vand.u32 %v1746, 4294901760
    %1748 = vmatpush1.msra.mxu0 %v1747
    %1749 = vmatprep.subr.mxu0 0.0
    %v1750 = vand.u32 %v96, 4294901760
    %v1751 = vsub.f32 %v96, %v1750
    %v1752 = vand.u32 %v1751, 4294901760
    %1753 = vmatpush1.msra.mxu0 %v1752
    %1754 = vmatprep.subr.mxu0 0.0
    %v1755 = vand.u32 %v97, 4294901760
    %v1756 = vsub.f32 %v97, %v1755
    %v1757 = vand.u32 %v1756, 4294901760
    %1758 = vmatpush1.msra.mxu0 %v1757
    %1759 = vmatprep.subr.mxu0 0.0
    %v1760 = vand.u32 %v98, 4294901760
    %v1761 = vsub.f32 %v98, %v1760
    %v1762 = vand.u32 %v1761, 4294901760
    %1763 = vmatpush1.msra.mxu0 %v1762
    %1764 = vmatprep.subr.mxu0 0.0
    %v1765 = vand.u32 %v99, 4294901760
    %v1766 = vsub.f32 %v99, %v1765
    %v1767 = vand.u32 %v1766, 4294901760
    %1768 = vmatpush1.msra.mxu0 %v1767
    %1769 = vmatprep.subr.mxu0 0.0
    %v1770 = vand.u32 %v100, 4294901760
    %v1771 = vsub.f32 %v100, %v1770
    %v1772 = vand.u32 %v1771, 4294901760
    %1773 = vmatpush1.msra.mxu0 %v1772
    %1774 = vmatprep.subr.mxu0 0.0
    %v1775 = vand.u32 %v101, 4294901760
    %v1776 = vsub.f32 %v101, %v1775
    %v1777 = vand.u32 %v1776, 4294901760
    %1778 = vmatpush1.msra.mxu0 %v1777
    %1779 = vmatprep.subr.mxu0 0.0
    %v1780 = vand.u32 %v102, 4294901760
    %v1781 = vsub.f32 %v102, %v1780
    %v1782 = vand.u32 %v1781, 4294901760
    %1783 = vmatpush1.msra.mxu0 %v1782
    %1784 = vmatprep.subr.mxu0 0.0
    %v1785 = vand.u32 %v103, 4294901760
    %v1786 = vsub.f32 %v103, %v1785
    %v1787 = vand.u32 %v1786, 4294901760
    %1788 = vmatpush1.msra.mxu0 %v1787
    %1789 = vmatprep.subr.mxu0 0.0
    %v1790 = vand.u32 %v104, 4294901760
    %v1791 = vsub.f32 %v104, %v1790
    %v1792 = vand.u32 %v1791, 4294901760
    %1793 = vmatpush1.msra.mxu0 %v1792
    %1794 = vmatprep.subr.mxu0 0.0
    %v1795 = vand.u32 %v105, 4294901760
    %v1796 = vsub.f32 %v105, %v1795
    %v1797 = vand.u32 %v1796, 4294901760
    %1798 = vmatpush1.msra.mxu0 %v1797
    %1799 = vmatprep.subr.mxu0 0.0
    %v1800 = vand.u32 %v106, 4294901760
    %v1801 = vsub.f32 %v106, %v1800
    %v1802 = vand.u32 %v1801, 4294901760
    %1803 = vmatpush1.msra.mxu0 %v1802
    %v1804 = vand.u32 %v166, 4294901760
    %1805 = vmatprep.mubr.f32.mxu0 %v1804
    %v1806 = vand.u32 %v164, 4294901760
    %1807 = vmatmul.mubr.f32.gmra.mrb[0].mxu0 %v1806
    %v1808 = vpop.f32.mrb[0].mxu0
    %v1809 = vadd.f32 %v1641, %v1808
    %v1810 = vpop.f32.mrb[0].mxu0
    %1811 = vdwg.mxu0
    %1812 = vmatprep.subr.mxu0 0.0
    %v1813 = vand.u32 %v75, 4294901760
    %1814 = vmatpush1.msra.mxu0 %v1813
    %1815 = vmatprep.subr.mxu0 0.0
    %v1816 = vand.u32 %v76, 4294901760
    %1817 = vmatpush1.msra.mxu0 %v1816
    %1818 = vmatprep.subr.mxu0 0.0
    %v1819 = vand.u32 %v77, 4294901760
    %1820 = vmatpush1.msra.mxu0 %v1819
    %1821 = vmatprep.subr.mxu0 0.0
    %v1822 = vand.u32 %v78, 4294901760
    %1823 = vmatpush1.msra.mxu0 %v1822
    %1824 = vmatprep.subr.mxu0 0.0
    %v1825 = vand.u32 %v79, 4294901760
    %1826 = vmatpush1.msra.mxu0 %v1825
    %1827 = vmatprep.subr.mxu0 0.0
    %v1828 = vand.u32 %v80, 4294901760
    %1829 = vmatpush1.msra.mxu0 %v1828
    %1830 = vmatprep.subr.mxu0 0.0
    %v1831 = vand.u32 %v81, 4294901760
    %1832 = vmatpush1.msra.mxu0 %v1831
    %1833 = vmatprep.subr.mxu0 0.0
    %v1834 = vand.u32 %v82, 4294901760
    %1835 = vmatpush1.msra.mxu0 %v1834
    %1836 = vmatprep.subr.mxu0 0.0
    %v1837 = vand.u32 %v83, 4294901760
    %1838 = vmatpush1.msra.mxu0 %v1837
    %1839 = vmatprep.subr.mxu0 0.0
    %v1840 = vand.u32 %v84, 4294901760
    %1841 = vmatpush1.msra.mxu0 %v1840
    %1842 = vmatprep.subr.mxu0 0.0
    %v1843 = vand.u32 %v85, 4294901760
    %1844 = vmatpush1.msra.mxu0 %v1843
    %1845 = vmatprep.subr.mxu0 0.0
    %v1846 = vand.u32 %v86, 4294901760
    %1847 = vmatpush1.msra.mxu0 %v1846
    %1848 = vmatprep.subr.mxu0 0.0
    %v1849 = vand.u32 %v87, 4294901760
    %1850 = vmatpush1.msra.mxu0 %v1849
    %1851 = vmatprep.subr.mxu0 0.0
    %v1852 = vand.u32 %v88, 4294901760
    %1853 = vmatpush1.msra.mxu0 %v1852
    %1854 = vmatprep.subr.mxu0 0.0
    %v1855 = vand.u32 %v89, 4294901760
    %1856 = vmatpush1.msra.mxu0 %v1855
    %1857 = vmatprep.subr.mxu0 0.0
    %v1858 = vand.u32 %v90, 4294901760
    %1859 = vmatpush1.msra.mxu0 %v1858
    %1860 = vmatprep.subr.mxu0 0.0
    %v1861 = vand.u32 %v91, 4294901760
    %1862 = vmatpush1.msra.mxu0 %v1861
    %1863 = vmatprep.subr.mxu0 0.0
    %v1864 = vand.u32 %v92, 4294901760
    %1865 = vmatpush1.msra.mxu0 %v1864
    %1866 = vmatprep.subr.mxu0 0.0
    %v1867 = vand.u32 %v93, 4294901760
    %1868 = vmatpush1.msra.mxu0 %v1867
    %1869 = vmatprep.subr.mxu0 0.0
    %v1870 = vand.u32 %v94, 4294901760
    %1871 = vmatpush1.msra.mxu0 %v1870
    %1872 = vmatprep.subr.mxu0 0.0
    %v1873 = vand.u32 %v95, 4294901760
    %1874 = vmatpush1.msra.mxu0 %v1873
    %1875 = vmatprep.subr.mxu0 0.0
    %v1876 = vand.u32 %v96, 4294901760
    %1877 = vmatpush1.msra.mxu0 %v1876
    %1878 = vmatprep.subr.mxu0 0.0
    %v1879 = vand.u32 %v97, 4294901760
    %1880 = vmatpush1.msra.mxu0 %v1879
    %1881 = vmatprep.subr.mxu0 0.0
    %v1882 = vand.u32 %v98, 4294901760
    %1883 = vmatpush1.msra.mxu0 %v1882
    %1884 = vmatprep.subr.mxu0 0.0
    %v1885 = vand.u32 %v99, 4294901760
    %1886 = vmatpush1.msra.mxu0 %v1885
    %1887 = vmatprep.subr.mxu0 0.0
    %v1888 = vand.u32 %v100, 4294901760
    %1889 = vmatpush1.msra.mxu0 %v1888
    %1890 = vmatprep.subr.mxu0 0.0
    %v1891 = vand.u32 %v101, 4294901760
    %1892 = vmatpush1.msra.mxu0 %v1891
    %1893 = vmatprep.subr.mxu0 0.0
    %v1894 = vand.u32 %v102, 4294901760
    %1895 = vmatpush1.msra.mxu0 %v1894
    %1896 = vmatprep.subr.mxu0 0.0
    %v1897 = vand.u32 %v103, 4294901760
    %1898 = vmatpush1.msra.mxu0 %v1897
    %1899 = vmatprep.subr.mxu0 0.0
    %v1900 = vand.u32 %v104, 4294901760
    %1901 = vmatpush1.msra.mxu0 %v1900
    %1902 = vmatprep.subr.mxu0 0.0
    %v1903 = vand.u32 %v105, 4294901760
    %1904 = vmatpush1.msra.mxu0 %v1903
    %1905 = vmatprep.subr.mxu0 0.0
    %v1906 = vand.u32 %v106, 4294901760
    %1907 = vmatpush1.msra.mxu0 %v1906
    %v1908 = vand.u32 %v166, 4294901760
    %1909 = vmatprep.mubr.f32.mxu0 %v1908
    %v1910 = vand.u32 %v164, 4294901760
    %1911 = vmatmul.mubr.f32.gmra.mrb[0].mxu0 %v1910
    %v1912 = vpop.f32.mrb[0].mxu0
    %v1913 = vadd.f32 %v1809, %v1912
    %v1914 = vpop.f32.mrb[0].mxu0
    %1915 = vdwg.mxu0
    %1916 = vmatprep.subr.mxu0 0.0
    %v1917 = vand.u32 %v107, 4294901760
    %1918 = vmatpush1.msra.mxu0 %v1917
    %1919 = vmatprep.subr.mxu0 0.0
    %v1920 = vand.u32 %v108, 4294901760
    %1921 = vmatpush1.msra.mxu0 %v1920
    %1922 = vmatprep.subr.mxu0 0.0
    %v1923 = vand.u32 %v109, 4294901760
    %1924 = vmatpush1.msra.mxu0 %v1923
    %1925 = vmatprep.subr.mxu0 0.0
    %v1926 = vand.u32 %v110, 4294901760
    %1927 = vmatpush1.msra.mxu0 %v1926
    %1928 = vmatprep.subr.mxu0 0.0
    %v1929 = vand.u32 %v111, 4294901760
    %1930 = vmatpush1.msra.mxu0 %v1929
    %1931 = vmatprep.subr.mxu0 0.0
    %v1932 = vand.u32 %v112, 4294901760
    %1933 = vmatpush1.msra.mxu0 %v1932
    %1934 = vmatprep.subr.mxu0 0.0
    %v1935 = vand.u32 %v113, 4294901760
    %1936 = vmatpush1.msra.mxu0 %v1935
    %1937 = vmatprep.subr.mxu0 0.0
    %v1938 = vand.u32 %v114, 4294901760
    %1939 = vmatpush1.msra.mxu0 %v1938
    %1940 = vmatprep.subr.mxu0 0.0
    %v1941 = vand.u32 %v115, 4294901760
    %1942 = vmatpush1.msra.mxu0 %v1941
    %1943 = vmatprep.subr.mxu0 0.0
    %v1944 = vand.u32 %v116, 4294901760
    %1945 = vmatpush1.msra.mxu0 %v1944
    %1946 = vmatprep.subr.mxu0 0.0
    %v1947 = vand.u32 %v117, 4294901760
    %1948 = vmatpush1.msra.mxu0 %v1947
    %1949 = vmatprep.subr.mxu0 0.0
    %v1950 = vand.u32 %v118, 4294901760
    %1951 = vmatpush1.msra.mxu0 %v1950
    %1952 = vmatprep.subr.mxu0 0.0
    %v1953 = vand.u32 %v119, 4294901760
    %1954 = vmatpush1.msra.mxu0 %v1953
    %1955 = vmatprep.subr.mxu0 0.0
    %v1956 = vand.u32 %v120, 4294901760
    %1957 = vmatpush1.msra.mxu0 %v1956
    %1958 = vmatprep.subr.mxu0 0.0
    %v1959 = vand.u32 %v121, 4294901760
    %1960 = vmatpush1.msra.mxu0 %v1959
    %1961 = vmatprep.subr.mxu0 0.0
    %v1962 = vand.u32 %v122, 4294901760
    %1963 = vmatpush1.msra.mxu0 %v1962
    %1964 = vmatprep.subr.mxu0 0.0
    %v1965 = vand.u32 %v123, 4294901760
    %1966 = vmatpush1.msra.mxu0 %v1965
    %1967 = vmatprep.subr.mxu0 0.0
    %v1968 = vand.u32 %v124, 4294901760
    %1969 = vmatpush1.msra.mxu0 %v1968
    %1970 = vmatprep.subr.mxu0 0.0
    %v1971 = vand.u32 %v125, 4294901760
    %1972 = vmatpush1.msra.mxu0 %v1971
    %1973 = vmatprep.subr.mxu0 0.0
    %v1974 = vand.u32 %v126, 4294901760
    %1975 = vmatpush1.msra.mxu0 %v1974
    %1976 = vmatprep.subr.mxu0 0.0
    %v1977 = vand.u32 %v127, 4294901760
    %1978 = vmatpush1.msra.mxu0 %v1977
    %1979 = vmatprep.subr.mxu0 0.0
    %v1980 = vand.u32 %v128, 4294901760
    %1981 = vmatpush1.msra.mxu0 %v1980
    %1982 = vmatprep.subr.mxu0 0.0
    %v1983 = vand.u32 %v129, 4294901760
    %1984 = vmatpush1.msra.mxu0 %v1983
    %1985 = vmatprep.subr.mxu0 0.0
    %v1986 = vand.u32 %v130, 4294901760
    %1987 = vmatpush1.msra.mxu0 %v1986
    %1988 = vmatprep.subr.mxu0 0.0
    %v1989 = vand.u32 %v131, 4294901760
    %1990 = vmatpush1.msra.mxu0 %v1989
    %1991 = vmatprep.subr.mxu0 0.0
    %v1992 = vand.u32 %v132, 4294901760
    %1993 = vmatpush1.msra.mxu0 %v1992
    %1994 = vmatprep.subr.mxu0 0.0
    %v1995 = vand.u32 %v133, 4294901760
    %1996 = vmatpush1.msra.mxu0 %v1995
    %1997 = vmatprep.subr.mxu0 0.0
    %v1998 = vand.u32 %v134, 4294901760
    %1999 = vmatpush1.msra.mxu0 %v1998
    %2000 = vmatprep.subr.mxu0 0.0
    %v2001 = vand.u32 %v135, 4294901760
    %2002 = vmatpush1.msra.mxu0 %v2001
    %2003 = vmatprep.subr.mxu0 0.0
    %v2004 = vand.u32 %v136, 4294901760
    %2005 = vmatpush1.msra.mxu0 %v2004
    %2006 = vmatprep.subr.mxu0 0.0
    %v2007 = vand.u32 %v137, 4294901760
    %2008 = vmatpush1.msra.mxu0 %v2007
    %2009 = vmatprep.subr.mxu0 0.0
    %v2010 = vand.u32 %v138, 4294901760
    %2011 = vmatpush1.msra.mxu0 %v2010
    %v2012 = vand.u32 %v182, 4294901760
    %v2013 = vsub.f32 %v182, %v2012
    %v2014 = vand.u32 %v2013, 4294901760
    %v2015 = vsub.f32 %v2013, %v2014
    %v2016 = vand.u32 %v2015, 4294901760
    %2017 = vmatprep.mubr.f32.mxu0 %v2016
    %v2018 = vand.u32 %v174, 4294901760
    %v2019 = vsub.f32 %v174, %v2018
    %v2020 = vand.u32 %v2019, 4294901760
    %v2021 = vsub.f32 %v2019, %v2020
    %v2022 = vand.u32 %v2021, 4294901760
    %2023 = vmatmul.mubr.f32.gmra.mrb[0].mxu0 %v2022
    %v2024 = vpop.f32.mrb[0].mxu0
    %v2025 = vadd.f32 %v1913, %v2024
    %v2026 = vpop.f32.mrb[0].mxu0
    %2027 = vdwg.mxu0
    %2028 = vmatprep.subr.mxu0 0.0
    %v2029 = vand.u32 %v107, 4294901760
    %v2030 = vsub.f32 %v107, %v2029
    %v2031 = vand.u32 %v2030, 4294901760
    %v2032 = vsub.f32 %v2030, %v2031
    %v2033 = vand.u32 %v2032, 4294901760
    %2034 = vmatpush1.msra.mxu0 %v2033
    %2035 = vmatprep.subr.mxu0 0.0
    %v2036 = vand.u32 %v108, 4294901760
    %v2037 = vsub.f32 %v108, %v2036
    %v2038 = vand.u32 %v2037, 4294901760
    %v2039 = vsub.f32 %v2037, %v2038
    %v2040 = vand.u32 %v2039, 4294901760
    %2041 = vmatpush1.msra.mxu0 %v2040
    %2042 = vmatprep.subr.mxu0 0.0
    %v2043 = vand.u32 %v109, 4294901760
    %v2044 = vsub.f32 %v109, %v2043
    %v2045 = vand.u32 %v2044, 4294901760
    %v2046 = vsub.f32 %v2044, %v2045
    %v2047 = vand.u32 %v2046, 4294901760
    %2048 = vmatpush1.msra.mxu0 %v2047
    %2049 = vmatprep.subr.mxu0 0.0
    %v2050 = vand.u32 %v110, 4294901760
    %v2051 = vsub.f32 %v110, %v2050
    %v2052 = vand.u32 %v2051, 4294901760
    %v2053 = vsub.f32 %v2051, %v2052
    %v2054 = vand.u32 %v2053, 4294901760
    %2055 = vmatpush1.msra.mxu0 %v2054
    %2056 = vmatprep.subr.mxu0 0.0
    %v2057 = vand.u32 %v111, 4294901760
    %v2058 = vsub.f32 %v111, %v2057
    %v2059 = vand.u32 %v2058, 4294901760
    %v2060 = vsub.f32 %v2058, %v2059
    %v2061 = vand.u32 %v2060, 4294901760
    %2062 = vmatpush1.msra.mxu0 %v2061
    %2063 = vmatprep.subr.mxu0 0.0
    %v2064 = vand.u32 %v112, 4294901760
    %v2065 = vsub.f32 %v112, %v2064
    %v2066 = vand.u32 %v2065, 4294901760
    %v2067 = vsub.f32 %v2065, %v2066
    %v2068 = vand.u32 %v2067, 4294901760
    %2069 = vmatpush1.msra.mxu0 %v2068
    %2070 = vmatprep.subr.mxu0 0.0
    %v2071 = vand.u32 %v113, 4294901760
    %v2072 = vsub.f32 %v113, %v2071
    %v2073 = vand.u32 %v2072, 4294901760
    %v2074 = vsub.f32 %v2072, %v2073
    %v2075 = vand.u32 %v2074, 4294901760
    %2076 = vmatpush1.msra.mxu0 %v2075
    %2077 = vmatprep.subr.mxu0 0.0
    %v2078 = vand.u32 %v114, 4294901760
    %v2079 = vsub.f32 %v114, %v2078
    %v2080 = vand.u32 %v2079, 4294901760
    %v2081 = vsub.f32 %v2079, %v2080
    %v2082 = vand.u32 %v2081, 4294901760
    %2083 = vmatpush1.msra.mxu0 %v2082
    %2084 = vmatprep.subr.mxu0 0.0
    %v2085 = vand.u32 %v115, 4294901760
    %v2086 = vsub.f32 %v115, %v2085
    %v2087 = vand.u32 %v2086, 4294901760
    %v2088 = vsub.f32 %v2086, %v2087
    %v2089 = vand.u32 %v2088, 4294901760
    %2090 = vmatpush1.msra.mxu0 %v2089
    %2091 = vmatprep.subr.mxu0 0.0
    %v2092 = vand.u32 %v116, 4294901760
    %v2093 = vsub.f32 %v116, %v2092
    %v2094 = vand.u32 %v2093, 4294901760
    %v2095 = vsub.f32 %v2093, %v2094
    %v2096 = vand.u32 %v2095, 4294901760
    %2097 = vmatpush1.msra.mxu0 %v2096
    %2098 = vmatprep.subr.mxu0 0.0
    %v2099 = vand.u32 %v117, 4294901760
    %v2100 = vsub.f32 %v117, %v2099
    %v2101 = vand.u32 %v2100, 4294901760
    %v2102 = vsub.f32 %v2100, %v2101
    %v2103 = vand.u32 %v2102, 4294901760
    %2104 = vmatpush1.msra.mxu0 %v2103
    %2105 = vmatprep.subr.mxu0 0.0
    %v2106 = vand.u32 %v118, 4294901760
    %v2107 = vsub.f32 %v118, %v2106
    %v2108 = vand.u32 %v2107, 4294901760
    %v2109 = vsub.f32 %v2107, %v2108
    %v2110 = vand.u32 %v2109, 4294901760
    %2111 = vmatpush1.msra.mxu0 %v2110
    %2112 = vmatprep.subr.mxu0 0.0
    %v2113 = vand.u32 %v119, 4294901760
    %v2114 = vsub.f32 %v119, %v2113
    %v2115 = vand.u32 %v2114, 4294901760
    %v2116 = vsub.f32 %v2114, %v2115
    %v2117 = vand.u32 %v2116, 4294901760
    %2118 = vmatpush1.msra.mxu0 %v2117
    %2119 = vmatprep.subr.mxu0 0.0
    %v2120 = vand.u32 %v120, 4294901760
    %v2121 = vsub.f32 %v120, %v2120
    %v2122 = vand.u32 %v2121, 4294901760
    %v2123 = vsub.f32 %v2121, %v2122
    %v2124 = vand.u32 %v2123, 4294901760
    %2125 = vmatpush1.msra.mxu0 %v2124
    %2126 = vmatprep.subr.mxu0 0.0
    %v2127 = vand.u32 %v121, 4294901760
    %v2128 = vsub.f32 %v121, %v2127
    %v2129 = vand.u32 %v2128, 4294901760
    %v2130 = vsub.f32 %v2128, %v2129
    %v2131 = vand.u32 %v2130, 4294901760
    %2132 = vmatpush1.msra.mxu0 %v2131
    %2133 = vmatprep.subr.mxu0 0.0
    %v2134 = vand.u32 %v122, 4294901760
    %v2135 = vsub.f32 %v122, %v2134
    %v2136 = vand.u32 %v2135, 4294901760
    %v2137 = vsub.f32 %v2135, %v2136
    %v2138 = vand.u32 %v2137, 4294901760
    %2139 = vmatpush1.msra.mxu0 %v2138
    %2140 = vmatprep.subr.mxu0 0.0
    %v2141 = vand.u32 %v123, 4294901760
    %v2142 = vsub.f32 %v123, %v2141
    %v2143 = vand.u32 %v2142, 4294901760
    %v2144 = vsub.f32 %v2142, %v2143
    %v2145 = vand.u32 %v2144, 4294901760
    %2146 = vmatpush1.msra.mxu0 %v2145
    %2147 = vmatprep.subr.mxu0 0.0
    %v2148 = vand.u32 %v124, 4294901760
    %v2149 = vsub.f32 %v124, %v2148
    %v2150 = vand.u32 %v2149, 4294901760
    %v2151 = vsub.f32 %v2149, %v2150
    %v2152 = vand.u32 %v2151, 4294901760
    %2153 = vmatpush1.msra.mxu0 %v2152
    %2154 = vmatprep.subr.mxu0 0.0
    %v2155 = vand.u32 %v125, 4294901760
    %v2156 = vsub.f32 %v125, %v2155
    %v2157 = vand.u32 %v2156, 4294901760
    %v2158 = vsub.f32 %v2156, %v2157
    %v2159 = vand.u32 %v2158, 4294901760
    %2160 = vmatpush1.msra.mxu0 %v2159
    %2161 = vmatprep.subr.mxu0 0.0
    %v2162 = vand.u32 %v126, 4294901760
    %v2163 = vsub.f32 %v126, %v2162
    %v2164 = vand.u32 %v2163, 4294901760
    %v2165 = vsub.f32 %v2163, %v2164
    %v2166 = vand.u32 %v2165, 4294901760
    %2167 = vmatpush1.msra.mxu0 %v2166
    %2168 = vmatprep.subr.mxu0 0.0
    %v2169 = vand.u32 %v127, 4294901760
    %v2170 = vsub.f32 %v127, %v2169
    %v2171 = vand.u32 %v2170, 4294901760
    %v2172 = vsub.f32 %v2170, %v2171
    %v2173 = vand.u32 %v2172, 4294901760
    %2174 = vmatpush1.msra.mxu0 %v2173
    %2175 = vmatprep.subr.mxu0 0.0
    %v2176 = vand.u32 %v128, 4294901760
    %v2177 = vsub.f32 %v128, %v2176
    %v2178 = vand.u32 %v2177, 4294901760
    %v2179 = vsub.f32 %v2177, %v2178
    %v2180 = vand.u32 %v2179, 4294901760
    %2181 = vmatpush1.msra.mxu0 %v2180
    %2182 = vmatprep.subr.mxu0 0.0
    %v2183 = vand.u32 %v129, 4294901760
    %v2184 = vsub.f32 %v129, %v2183
    %v2185 = vand.u32 %v2184, 4294901760
    %v2186 = vsub.f32 %v2184, %v2185
    %v2187 = vand.u32 %v2186, 4294901760
    %2188 = vmatpush1.msra.mxu0 %v2187
    %2189 = vmatprep.subr.mxu0 0.0
    %v2190 = vand.u32 %v130, 4294901760
    %v2191 = vsub.f32 %v130, %v2190
    %v2192 = vand.u32 %v2191, 4294901760
    %v2193 = vsub.f32 %v2191, %v2192
    %v2194 = vand.u32 %v2193, 4294901760
    %2195 = vmatpush1.msra.mxu0 %v2194
    %2196 = vmatprep.subr.mxu0 0.0
    %v2197 = vand.u32 %v131, 4294901760
    %v2198 = vsub.f32 %v131, %v2197
    %v2199 = vand.u32 %v2198, 4294901760
    %v2200 = vsub.f32 %v2198, %v2199
    %v2201 = vand.u32 %v2200, 4294901760
    %2202 = vmatpush1.msra.mxu0 %v2201
    %2203 = vmatprep.subr.mxu0 0.0
    %v2204 = vand.u32 %v132, 4294901760
    %v2205 = vsub.f32 %v132, %v2204
    %v2206 = vand.u32 %v2205, 4294901760
    %v2207 = vsub.f32 %v2205, %v2206
    %v2208 = vand.u32 %v2207, 4294901760
    %2209 = vmatpush1.msra.mxu0 %v2208
    %2210 = vmatprep.subr.mxu0 0.0
    %v2211 = vand.u32 %v133, 4294901760
    %v2212 = vsub.f32 %v133, %v2211
    %v2213 = vand.u32 %v2212, 4294901760
    %v2214 = vsub.f32 %v2212, %v2213
    %v2215 = vand.u32 %v2214, 4294901760
    %2216 = vmatpush1.msra.mxu0 %v2215
    %2217 = vmatprep.subr.mxu0 0.0
    %v2218 = vand.u32 %v134, 4294901760
    %v2219 = vsub.f32 %v134, %v2218
    %v2220 = vand.u32 %v2219, 4294901760
    %v2221 = vsub.f32 %v2219, %v2220
    %v2222 = vand.u32 %v2221, 4294901760
    %2223 = vmatpush1.msra.mxu0 %v2222
    %2224 = vmatprep.subr.mxu0 0.0
    %v2225 = vand.u32 %v135, 4294901760
    %v2226 = vsub.f32 %v135, %v2225
    %v2227 = vand.u32 %v2226, 4294901760
    %v2228 = vsub.f32 %v2226, %v2227
    %v2229 = vand.u32 %v2228, 4294901760
    %2230 = vmatpush1.msra.mxu0 %v2229
    %2231 = vmatprep.subr.mxu0 0.0
    %v2232 = vand.u32 %v136, 4294901760
    %v2233 = vsub.f32 %v136, %v2232
    %v2234 = vand.u32 %v2233, 4294901760
    %v2235 = vsub.f32 %v2233, %v2234
    %v2236 = vand.u32 %v2235, 4294901760
    %2237 = vmatpush1.msra.mxu0 %v2236
    %2238 = vmatprep.subr.mxu0 0.0
    %v2239 = vand.u32 %v137, 4294901760
    %v2240 = vsub.f32 %v137, %v2239
    %v2241 = vand.u32 %v2240, 4294901760
    %v2242 = vsub.f32 %v2240, %v2241
    %v2243 = vand.u32 %v2242, 4294901760
    %2244 = vmatpush1.msra.mxu0 %v2243
    %2245 = vmatprep.subr.mxu0 0.0
    %v2246 = vand.u32 %v138, 4294901760
    %v2247 = vsub.f32 %v138, %v2246
    %v2248 = vand.u32 %v2247, 4294901760
    %v2249 = vsub.f32 %v2247, %v2248
    %v2250 = vand.u32 %v2249, 4294901760
    %2251 = vmatpush1.msra.mxu0 %v2250
    %v2252 = vand.u32 %v182, 4294901760
    %2253 = vmatprep.mubr.f32.mxu0 %v2252
    %v2254 = vand.u32 %v174, 4294901760
    %2255 = vmatmul.mubr.f32.gmra.mrb[0].mxu0 %v2254
    %v2256 = vpop.f32.mrb[0].mxu0
    %v2257 = vadd.f32 %v2025, %v2256
    %v2258 = vpop.f32.mrb[0].mxu0
    %2259 = vdwg.mxu0
    %2260 = vmatprep.subr.mxu0 0.0
    %v2261 = vand.u32 %v107, 4294901760
    %v2262 = vsub.f32 %v107, %v2261
    %2263 = vmatpush1.msra.mxu0 %v2262
    %2264 = vmatprep.subr.mxu0 0.0
    %v2265 = vand.u32 %v108, 4294901760
    %v2266 = vsub.f32 %v108, %v2265
    %2267 = vmatpush1.msra.mxu0 %v2266
    %2268 = vmatprep.subr.mxu0 0.0
    %v2269 = vand.u32 %v109, 4294901760
    %v2270 = vsub.f32 %v109, %v2269
    %2271 = vmatpush1.msra.mxu0 %v2270
    %2272 = vmatprep.subr.mxu0 0.0
    %v2273 = vand.u32 %v110, 4294901760
    %v2274 = vsub.f32 %v110, %v2273
    %2275 = vmatpush1.msra.mxu0 %v2274
    %2276 = vmatprep.subr.mxu0 0.0
    %v2277 = vand.u32 %v111, 4294901760
    %v2278 = vsub.f32 %v111, %v2277
    %2279 = vmatpush1.msra.mxu0 %v2278
    %2280 = vmatprep.subr.mxu0 0.0
    %v2281 = vand.u32 %v112, 4294901760
    %v2282 = vsub.f32 %v112, %v2281
    %2283 = vmatpush1.msra.mxu0 %v2282
    %2284 = vmatprep.subr.mxu0 0.0
    %v2285 = vand.u32 %v113, 4294901760
    %v2286 = vsub.f32 %v113, %v2285
    %2287 = vmatpush1.msra.mxu0 %v2286
    %2288 = vmatprep.subr.mxu0 0.0
    %v2289 = vand.u32 %v114, 4294901760
    %v2290 = vsub.f32 %v114, %v2289
    %2291 = vmatpush1.msra.mxu0 %v2290
    %2292 = vmatprep.subr.mxu0 0.0
    %v2293 = vand.u32 %v115, 4294901760
    %v2294 = vsub.f32 %v115, %v2293
    %2295 = vmatpush1.msra.mxu0 %v2294
    %2296 = vmatprep.subr.mxu0 0.0
    %v2297 = vand.u32 %v116, 4294901760
    %v2298 = vsub.f32 %v116, %v2297
    %2299 = vmatpush1.msra.mxu0 %v2298
    %2300 = vmatprep.subr.mxu0 0.0
    %v2301 = vand.u32 %v117, 4294901760
    %v2302 = vsub.f32 %v117, %v2301
    %2303 = vmatpush1.msra.mxu0 %v2302
    %2304 = vmatprep.subr.mxu0 0.0
    %v2305 = vand.u32 %v118, 4294901760
    %v2306 = vsub.f32 %v118, %v2305
    %2307 = vmatpush1.msra.mxu0 %v2306
    %2308 = vmatprep.subr.mxu0 0.0
    %v2309 = vand.u32 %v119, 4294901760
    %v2310 = vsub.f32 %v119, %v2309
    %2311 = vmatpush1.msra.mxu0 %v2310
    %2312 = vmatprep.subr.mxu0 0.0
    %v2313 = vand.u32 %v120, 4294901760
    %v2314 = vsub.f32 %v120, %v2313
    %2315 = vmatpush1.msra.mxu0 %v2314
    %2316 = vmatprep.subr.mxu0 0.0
    %v2317 = vand.u32 %v121, 4294901760
    %v2318 = vsub.f32 %v121, %v2317
    %2319 = vmatpush1.msra.mxu0 %v2318
    %2320 = vmatprep.subr.mxu0 0.0
    %v2321 = vand.u32 %v122, 4294901760
    %v2322 = vsub.f32 %v122, %v2321
    %2323 = vmatpush1.msra.mxu0 %v2322
    %2324 = vmatprep.subr.mxu0 0.0
    %v2325 = vand.u32 %v123, 4294901760
    %v2326 = vsub.f32 %v123, %v2325
    %2327 = vmatpush1.msra.mxu0 %v2326
    %2328 = vmatprep.subr.mxu0 0.0
    %v2329 = vand.u32 %v124, 4294901760
    %v2330 = vsub.f32 %v124, %v2329
    %2331 = vmatpush1.msra.mxu0 %v2330
    %2332 = vmatprep.subr.mxu0 0.0
    %v2333 = vand.u32 %v125, 4294901760
    %v2334 = vsub.f32 %v125, %v2333
    %2335 = vmatpush1.msra.mxu0 %v2334
    %2336 = vmatprep.subr.mxu0 0.0
    %v2337 = vand.u32 %v126, 4294901760
    %v2338 = vsub.f32 %v126, %v2337
    %2339 = vmatpush1.msra.mxu0 %v2338
    %2340 = vmatprep.subr.mxu0 0.0
    %v2341 = vand.u32 %v127, 4294901760
    %v2342 = vsub.f32 %v127, %v2341
    %2343 = vmatpush1.msra.mxu0 %v2342
    %2344 = vmatprep.subr.mxu0 0.0
    %v2345 = vand.u32 %v128, 4294901760
    %v2346 = vsub.f32 %v128, %v2345
    %2347 = vmatpush1.msra.mxu0 %v2346
    %2348 = vmatprep.subr.mxu0 0.0
    %v2349 = vand.u32 %v129, 4294901760
    %v2350 = vsub.f32 %v129, %v2349
    %2351 = vmatpush1.msra.mxu0 %v2350
    %2352 = vmatprep.subr.mxu0 0.0
    %v2353 = vand.u32 %v130, 4294901760
    %v2354 = vsub.f32 %v130, %v2353
    %2355 = vmatpush1.msra.mxu0 %v2354
    %2356 = vmatprep.subr.mxu0 0.0
    %v2357 = vand.u32 %v131, 4294901760
    %v2358 = vsub.f32 %v131, %v2357
    %2359 = vmatpush1.msra.mxu0 %v2358
    %2360 = vmatprep.subr.mxu0 0.0
    %v2361 = vand.u32 %v132, 4294901760
    %v2362 = vsub.f32 %v132, %v2361
    %2363 = vmatpush1.msra.mxu0 %v2362
    %2364 = vmatprep.subr.mxu0 0.0
    %v2365 = vand.u32 %v133, 4294901760
    %v2366 = vsub.f32 %v133, %v2365
    %2367 = vmatpush1.msra.mxu0 %v2366
    %2368 = vmatprep.subr.mxu0 0.0
    %v2369 = vand.u32 %v134, 4294901760
    %v2370 = vsub.f32 %v134, %v2369
    %2371 = vmatpush1.msra.mxu0 %v2370
    %2372 = vmatprep.subr.mxu0 0.0
    %v2373 = vand.u32 %v135, 4294901760
    %v2374 = vsub.f32 %v135, %v2373
    %2375 = vmatpush1.msra.mxu0 %v2374
    %2376 = vmatprep.subr.mxu0 0.0
    %v2377 = vand.u32 %v136, 4294901760
    %v2378 = vsub.f32 %v136, %v2377
    %2379 = vmatpush1.msra.mxu0 %v2378
    %2380 = vmatprep.subr.mxu0 0.0
    %v2381 = vand.u32 %v137, 4294901760
    %v2382 = vsub.f32 %v137, %v2381
    %2383 = vmatpush1.msra.mxu0 %v2382
    %2384 = vmatprep.subr.mxu0 0.0
    %v2385 = vand.u32 %v138, 4294901760
    %v2386 = vsub.f32 %v138, %v2385
    %2387 = vmatpush1.msra.mxu0 %v2386
    %v2388 = vand.u32 %v182, 4294901760
    %v2389 = vsub.f32 %v182, %v2388
    %2390 = vmatprep.mubr.f32.mxu0 %v2389
    %v2391 = vand.u32 %v174, 4294901760
    %v2392 = vsub.f32 %v174, %v2391
    %2393 = vmatmul.mubr.f32.gmra.mrb[0].mxu0 %v2392
    %v2394 = vpop.f32.mrb[0].mxu0
    %v2395 = vadd.f32 %v2257, %v2394
    %v2396 = vpop.f32.mrb[0].mxu0
    %2397 = vdwg.mxu0
    %2398 = vmatprep.subr.mxu0 0.0
    %v2399 = vand.u32 %v107, 4294901760
    %2400 = vmatpush1.msra.mxu0 %v2399
    %2401 = vmatprep.subr.mxu0 0.0
    %v2402 = vand.u32 %v108, 4294901760
    %2403 = vmatpush1.msra.mxu0 %v2402
    %2404 = vmatprep.subr.mxu0 0.0
    %v2405 = vand.u32 %v109, 4294901760
    %2406 = vmatpush1.msra.mxu0 %v2405
    %2407 = vmatprep.subr.mxu0 0.0
    %v2408 = vand.u32 %v110, 4294901760
    %2409 = vmatpush1.msra.mxu0 %v2408
    %2410 = vmatprep.subr.mxu0 0.0
    %v2411 = vand.u32 %v111, 4294901760
    %2412 = vmatpush1.msra.mxu0 %v2411
    %2413 = vmatprep.subr.mxu0 0.0
    %v2414 = vand.u32 %v112, 4294901760
    %2415 = vmatpush1.msra.mxu0 %v2414
    %2416 = vmatprep.subr.mxu0 0.0
    %v2417 = vand.u32 %v113, 4294901760
    %2418 = vmatpush1.msra.mxu0 %v2417
    %2419 = vmatprep.subr.mxu0 0.0
    %v2420 = vand.u32 %v114, 4294901760
    %2421 = vmatpush1.msra.mxu0 %v2420
    %2422 = vmatprep.subr.mxu0 0.0
    %v2423 = vand.u32 %v115, 4294901760
    %2424 = vmatpush1.msra.mxu0 %v2423
    %2425 = vmatprep.subr.mxu0 0.0
    %v2426 = vand.u32 %v116, 4294901760
    %2427 = vmatpush1.msra.mxu0 %v2426
    %2428 = vmatprep.subr.mxu0 0.0
    %v2429 = vand.u32 %v117, 4294901760
    %2430 = vmatpush1.msra.mxu0 %v2429
    %2431 = vmatprep.subr.mxu0 0.0
    %v2432 = vand.u32 %v118, 4294901760
    %2433 = vmatpush1.msra.mxu0 %v2432
    %2434 = vmatprep.subr.mxu0 0.0
    %v2435 = vand.u32 %v119, 4294901760
    %2436 = vmatpush1.msra.mxu0 %v2435
    %2437 = vmatprep.subr.mxu0 0.0
    %v2438 = vand.u32 %v120, 4294901760
    %2439 = vmatpush1.msra.mxu0 %v2438
    %2440 = vmatprep.subr.mxu0 0.0
    %v2441 = vand.u32 %v121, 4294901760
    %2442 = vmatpush1.msra.mxu0 %v2441
    %2443 = vmatprep.subr.mxu0 0.0
    %v2444 = vand.u32 %v122, 4294901760
    %2445 = vmatpush1.msra.mxu0 %v2444
    %2446 = vmatprep.subr.mxu0 0.0
    %v2447 = vand.u32 %v123, 4294901760
    %2448 = vmatpush1.msra.mxu0 %v2447
    %2449 = vmatprep.subr.mxu0 0.0
    %v2450 = vand.u32 %v124, 4294901760
    %2451 = vmatpush1.msra.mxu0 %v2450
    %2452 = vmatprep.subr.mxu0 0.0
    %v2453 = vand.u32 %v125, 4294901760
    %2454 = vmatpush1.msra.mxu0 %v2453
    %2455 = vmatprep.subr.mxu0 0.0
    %v2456 = vand.u32 %v126, 4294901760
    %2457 = vmatpush1.msra.mxu0 %v2456
    %2458 = vmatprep.subr.mxu0 0.0
    %v2459 = vand.u32 %v127, 4294901760
    %2460 = vmatpush1.msra.mxu0 %v2459
    %2461 = vmatprep.subr.mxu0 0.0
    %v2462 = vand.u32 %v128, 4294901760
    %2463 = vmatpush1.msra.mxu0 %v2462
    %2464 = vmatprep.subr.mxu0 0.0
    %v2465 = vand.u32 %v129, 4294901760
    %2466 = vmatpush1.msra.mxu0 %v2465
    %2467 = vmatprep.subr.mxu0 0.0
    %v2468 = vand.u32 %v130, 4294901760
    %2469 = vmatpush1.msra.mxu0 %v2468
    %2470 = vmatprep.subr.mxu0 0.0
    %v2471 = vand.u32 %v131, 4294901760
    %2472 = vmatpush1.msra.mxu0 %v2471
    %2473 = vmatprep.subr.mxu0 0.0
    %v2474 = vand.u32 %v132, 4294901760
    %2475 = vmatpush1.msra.mxu0 %v2474
    %2476 = vmatprep.subr.mxu0 0.0
    %v2477 = vand.u32 %v133, 4294901760
    %2478 = vmatpush1.msra.mxu0 %v2477
    %2479 = vmatprep.subr.mxu0 0.0
    %v2480 = vand.u32 %v134, 4294901760
    %2481 = vmatpush1.msra.mxu0 %v2480
    %2482 = vmatprep.subr.mxu0 0.0
    %v2483 = vand.u32 %v135, 4294901760
    %2484 = vmatpush1.msra.mxu0 %v2483
    %2485 = vmatprep.subr.mxu0 0.0
    %v2486 = vand.u32 %v136, 4294901760
    %2487 = vmatpush1.msra.mxu0 %v2486
    %2488 = vmatprep.subr.mxu0 0.0
    %v2489 = vand.u32 %v137, 4294901760
    %2490 = vmatpush1.msra.mxu0 %v2489
    %2491 = vmatprep.subr.mxu0 0.0
    %v2492 = vand.u32 %v138, 4294901760
    %2493 = vmatpush1.msra.mxu0 %v2492
    %v2494 = vand.u32 %v182, 4294901760
    %v2495 = vsub.f32 %v182, %v2494
    %v2496 = vand.u32 %v2495, 4294901760
    %2497 = vmatprep.mubr.f32.mxu0 %v2496
    %v2498 = vand.u32 %v174, 4294901760
    %v2499 = vsub.f32 %v174, %v2498
    %v2500 = vand.u32 %v2499, 4294901760
    %2501 = vmatmul.mubr.f32.gmra.mrb[0].mxu0 %v2500
    %v2502 = vpop.f32.mrb[0].mxu0
    %v2503 = vadd.f32 %v2395, %v2502
    %v2504 = vpop.f32.mrb[0].mxu0
    %2505 = vdwg.mxu0
    %2506 = vmatprep.subr.mxu0 0.0
    %v2507 = vand.u32 %v107, 4294901760
    %v2508 = vsub.f32 %v107, %v2507
    %v2509 = vand.u32 %v2508, 4294901760
    %2510 = vmatpush1.msra.mxu0 %v2509
    %2511 = vmatprep.subr.mxu0 0.0
    %v2512 = vand.u32 %v108, 4294901760
    %v2513 = vsub.f32 %v108, %v2512
    %v2514 = vand.u32 %v2513, 4294901760
    %2515 = vmatpush1.msra.mxu0 %v2514
    %2516 = vmatprep.subr.mxu0 0.0
    %v2517 = vand.u32 %v109, 4294901760
    %v2518 = vsub.f32 %v109, %v2517
    %v2519 = vand.u32 %v2518, 4294901760
    %2520 = vmatpush1.msra.mxu0 %v2519
    %2521 = vmatprep.subr.mxu0 0.0
    %v2522 = vand.u32 %v110, 4294901760
    %v2523 = vsub.f32 %v110, %v2522
    %v2524 = vand.u32 %v2523, 4294901760
    %2525 = vmatpush1.msra.mxu0 %v2524
    %2526 = vmatprep.subr.mxu0 0.0
    %v2527 = vand.u32 %v111, 4294901760
    %v2528 = vsub.f32 %v111, %v2527
    %v2529 = vand.u32 %v2528, 4294901760
    %2530 = vmatpush1.msra.mxu0 %v2529
    %2531 = vmatprep.subr.mxu0 0.0
    %v2532 = vand.u32 %v112, 4294901760
    %v2533 = vsub.f32 %v112, %v2532
    %v2534 = vand.u32 %v2533, 4294901760
    %2535 = vmatpush1.msra.mxu0 %v2534
    %2536 = vmatprep.subr.mxu0 0.0
    %v2537 = vand.u32 %v113, 4294901760
    %v2538 = vsub.f32 %v113, %v2537
    %v2539 = vand.u32 %v2538, 4294901760
    %2540 = vmatpush1.msra.mxu0 %v2539
    %2541 = vmatprep.subr.mxu0 0.0
    %v2542 = vand.u32 %v114, 4294901760
    %v2543 = vsub.f32 %v114, %v2542
    %v2544 = vand.u32 %v2543, 4294901760
    %2545 = vmatpush1.msra.mxu0 %v2544
    %2546 = vmatprep.subr.mxu0 0.0
    %v2547 = vand.u32 %v115, 4294901760
    %v2548 = vsub.f32 %v115, %v2547
    %v2549 = vand.u32 %v2548, 4294901760
    %2550 = vmatpush1.msra.mxu0 %v2549
    %2551 = vmatprep.subr.mxu0 0.0
    %v2552 = vand.u32 %v116, 4294901760
    %v2553 = vsub.f32 %v116, %v2552
    %v2554 = vand.u32 %v2553, 4294901760
    %2555 = vmatpush1.msra.mxu0 %v2554
    %2556 = vmatprep.subr.mxu0 0.0
    %v2557 = vand.u32 %v117, 4294901760
    %v2558 = vsub.f32 %v117, %v2557
    %v2559 = vand.u32 %v2558, 4294901760
    %2560 = vmatpush1.msra.mxu0 %v2559
    %2561 = vmatprep.subr.mxu0 0.0
    %v2562 = vand.u32 %v118, 4294901760
    %v2563 = vsub.f32 %v118, %v2562
    %v2564 = vand.u32 %v2563, 4294901760
    %2565 = vmatpush1.msra.mxu0 %v2564
    %2566 = vmatprep.subr.mxu0 0.0
    %v2567 = vand.u32 %v119, 4294901760
    %v2568 = vsub.f32 %v119, %v2567
    %v2569 = vand.u32 %v2568, 4294901760
    %2570 = vmatpush1.msra.mxu0 %v2569
    %2571 = vmatprep.subr.mxu0 0.0
    %v2572 = vand.u32 %v120, 4294901760
    %v2573 = vsub.f32 %v120, %v2572
    %v2574 = vand.u32 %v2573, 4294901760
    %2575 = vmatpush1.msra.mxu0 %v2574
    %2576 = vmatprep.subr.mxu0 0.0
    %v2577 = vand.u32 %v121, 4294901760
    %v2578 = vsub.f32 %v121, %v2577
    %v2579 = vand.u32 %v2578, 4294901760
    %2580 = vmatpush1.msra.mxu0 %v2579
    %2581 = vmatprep.subr.mxu0 0.0
    %v2582 = vand.u32 %v122, 4294901760
    %v2583 = vsub.f32 %v122, %v2582
    %v2584 = vand.u32 %v2583, 4294901760
    %2585 = vmatpush1.msra.mxu0 %v2584
    %2586 = vmatprep.subr.mxu0 0.0
    %v2587 = vand.u32 %v123, 4294901760
    %v2588 = vsub.f32 %v123, %v2587
    %v2589 = vand.u32 %v2588, 4294901760
    %2590 = vmatpush1.msra.mxu0 %v2589
    %2591 = vmatprep.subr.mxu0 0.0
    %v2592 = vand.u32 %v124, 4294901760
    %v2593 = vsub.f32 %v124, %v2592
    %v2594 = vand.u32 %v2593, 4294901760
    %2595 = vmatpush1.msra.mxu0 %v2594
    %2596 = vmatprep.subr.mxu0 0.0
    %v2597 = vand.u32 %v125, 4294901760
    %v2598 = vsub.f32 %v125, %v2597
    %v2599 = vand.u32 %v2598, 4294901760
    %2600 = vmatpush1.msra.mxu0 %v2599
    %2601 = vmatprep.subr.mxu0 0.0
    %v2602 = vand.u32 %v126, 4294901760
    %v2603 = vsub.f32 %v126, %v2602
    %v2604 = vand.u32 %v2603, 4294901760
    %2605 = vmatpush1.msra.mxu0 %v2604
    %2606 = vmatprep.subr.mxu0 0.0
    %v2607 = vand.u32 %v127, 4294901760
    %v2608 = vsub.f32 %v127, %v2607
    %v2609 = vand.u32 %v2608, 4294901760
    %2610 = vmatpush1.msra.mxu0 %v2609
    %2611 = vmatprep.subr.mxu0 0.0
    %v2612 = vand.u32 %v128, 4294901760
    %v2613 = vsub.f32 %v128, %v2612
    %v2614 = vand.u32 %v2613, 4294901760
    %2615 = vmatpush1.msra.mxu0 %v2614
    %2616 = vmatprep.subr.mxu0 0.0
    %v2617 = vand.u32 %v129, 4294901760
    %v2618 = vsub.f32 %v129, %v2617
    %v2619 = vand.u32 %v2618, 4294901760
    %2620 = vmatpush1.msra.mxu0 %v2619
    %2621 = vmatprep.subr.mxu0 0.0
    %v2622 = vand.u32 %v130, 4294901760
    %v2623 = vsub.f32 %v130, %v2622
    %v2624 = vand.u32 %v2623, 4294901760
    %2625 = vmatpush1.msra.mxu0 %v2624
    %2626 = vmatprep.subr.mxu0 0.0
    %v2627 = vand.u32 %v131, 4294901760
    %v2628 = vsub.f32 %v131, %v2627
    %v2629 = vand.u32 %v2628, 4294901760
    %2630 = vmatpush1.msra.mxu0 %v2629
    %2631 = vmatprep.subr.mxu0 0.0
    %v2632 = vand.u32 %v132, 4294901760
    %v2633 = vsub.f32 %v132, %v2632
    %v2634 = vand.u32 %v2633, 4294901760
    %2635 = vmatpush1.msra.mxu0 %v2634
    %2636 = vmatprep.subr.mxu0 0.0
    %v2637 = vand.u32 %v133, 4294901760
    %v2638 = vsub.f32 %v133, %v2637
    %v2639 = vand.u32 %v2638, 4294901760
    %2640 = vmatpush1.msra.mxu0 %v2639
    %2641 = vmatprep.subr.mxu0 0.0
    %v2642 = vand.u32 %v134, 4294901760
    %v2643 = vsub.f32 %v134, %v2642
    %v2644 = vand.u32 %v2643, 4294901760
    %2645 = vmatpush1.msra.mxu0 %v2644
    %2646 = vmatprep.subr.mxu0 0.0
    %v2647 = vand.u32 %v135, 4294901760
    %v2648 = vsub.f32 %v135, %v2647
    %v2649 = vand.u32 %v2648, 4294901760
    %2650 = vmatpush1.msra.mxu0 %v2649
    %2651 = vmatprep.subr.mxu0 0.0
    %v2652 = vand.u32 %v136, 4294901760
    %v2653 = vsub.f32 %v136, %v2652
    %v2654 = vand.u32 %v2653, 4294901760
    %2655 = vmatpush1.msra.mxu0 %v2654
    %2656 = vmatprep.subr.mxu0 0.0
    %v2657 = vand.u32 %v137, 4294901760
    %v2658 = vsub.f32 %v137, %v2657
    %v2659 = vand.u32 %v2658, 4294901760
    %2660 = vmatpush1.msra.mxu0 %v2659
    %2661 = vmatprep.subr.mxu0 0.0
    %v2662 = vand.u32 %v138, 4294901760
    %v2663 = vsub.f32 %v138, %v2662
    %v2664 = vand.u32 %v2663, 4294901760
    %2665 = vmatpush1.msra.mxu0 %v2664
    %v2666 = vand.u32 %v182, 4294901760
    %2667 = vmatprep.mubr.f32.mxu0 %v2666
    %v2668 = vand.u32 %v174, 4294901760
    %2669 = vmatmul.mubr.f32.gmra.mrb[0].mxu0 %v2668
    %v2670 = vpop.f32.mrb[0].mxu0
    %v2671 = vadd.f32 %v2503, %v2670
    %v2672 = vpop.f32.mrb[0].mxu0
    %2673 = vdwg.mxu0
    %2674 = vmatprep.subr.mxu0 0.0
    %v2675 = vand.u32 %v107, 4294901760
    %2676 = vmatpush1.msra.mxu0 %v2675
    %2677 = vmatprep.subr.mxu0 0.0
    %v2678 = vand.u32 %v108, 4294901760
    %2679 = vmatpush1.msra.mxu0 %v2678
    %2680 = vmatprep.subr.mxu0 0.0
    %v2681 = vand.u32 %v109, 4294901760
    %2682 = vmatpush1.msra.mxu0 %v2681
    %2683 = vmatprep.subr.mxu0 0.0
    %v2684 = vand.u32 %v110, 4294901760
    %2685 = vmatpush1.msra.mxu0 %v2684
    %2686 = vmatprep.subr.mxu0 0.0
    %v2687 = vand.u32 %v111, 4294901760
    %2688 = vmatpush1.msra.mxu0 %v2687
    %2689 = vmatprep.subr.mxu0 0.0
    %v2690 = vand.u32 %v112, 4294901760
    %2691 = vmatpush1.msra.mxu0 %v2690
    %2692 = vmatprep.subr.mxu0 0.0
    %v2693 = vand.u32 %v113, 4294901760
    %2694 = vmatpush1.msra.mxu0 %v2693
    %2695 = vmatprep.subr.mxu0 0.0
    %v2696 = vand.u32 %v114, 4294901760
    %2697 = vmatpush1.msra.mxu0 %v2696
    %2698 = vmatprep.subr.mxu0 0.0
    %v2699 = vand.u32 %v115, 4294901760
    %2700 = vmatpush1.msra.mxu0 %v2699
    %2701 = vmatprep.subr.mxu0 0.0
    %v2702 = vand.u32 %v116, 4294901760
    %2703 = vmatpush1.msra.mxu0 %v2702
    %2704 = vmatprep.subr.mxu0 0.0
    %v2705 = vand.u32 %v117, 4294901760
    %2706 = vmatpush1.msra.mxu0 %v2705
    %2707 = vmatprep.subr.mxu0 0.0
    %v2708 = vand.u32 %v118, 4294901760
    %2709 = vmatpush1.msra.mxu0 %v2708
    %2710 = vmatprep.subr.mxu0 0.0
    %v2711 = vand.u32 %v119, 4294901760
    %2712 = vmatpush1.msra.mxu0 %v2711
    %2713 = vmatprep.subr.mxu0 0.0
    %v2714 = vand.u32 %v120, 4294901760
    %2715 = vmatpush1.msra.mxu0 %v2714
    %2716 = vmatprep.subr.mxu0 0.0
    %v2717 = vand.u32 %v121, 4294901760
    %2718 = vmatpush1.msra.mxu0 %v2717
    %2719 = vmatprep.subr.mxu0 0.0
    %v2720 = vand.u32 %v122, 4294901760
    %2721 = vmatpush1.msra.mxu0 %v2720
    %2722 = vmatprep.subr.mxu0 0.0
    %v2723 = vand.u32 %v123, 4294901760
    %2724 = vmatpush1.msra.mxu0 %v2723
    %2725 = vmatprep.subr.mxu0 0.0
    %v2726 = vand.u32 %v124, 4294901760
    %2727 = vmatpush1.msra.mxu0 %v2726
    %2728 = vmatprep.subr.mxu0 0.0
    %v2729 = vand.u32 %v125, 4294901760
    %2730 = vmatpush1.msra.mxu0 %v2729
    %2731 = vmatprep.subr.mxu0 0.0
    %v2732 = vand.u32 %v126, 4294901760
    %2733 = vmatpush1.msra.mxu0 %v2732
    %2734 = vmatprep.subr.mxu0 0.0
    %v2735 = vand.u32 %v127, 4294901760
    %2736 = vmatpush1.msra.mxu0 %v2735
    %2737 = vmatprep.subr.mxu0 0.0
    %v2738 = vand.u32 %v128, 4294901760
    %2739 = vmatpush1.msra.mxu0 %v2738
    %2740 = vmatprep.subr.mxu0 0.0
    %v2741 = vand.u32 %v129, 4294901760
    %2742 = vmatpush1.msra.mxu0 %v2741
    %2743 = vmatprep.subr.mxu0 0.0
    %v2744 = vand.u32 %v130, 4294901760
    %2745 = vmatpush1.msra.mxu0 %v2744
    %2746 = vmatprep.subr.mxu0 0.0
    %v2747 = vand.u32 %v131, 4294901760
    %2748 = vmatpush1.msra.mxu0 %v2747
    %2749 = vmatprep.subr.mxu0 0.0
    %v2750 = vand.u32 %v132, 4294901760
    %2751 = vmatpush1.msra.mxu0 %v2750
    %2752 = vmatprep.subr.mxu0 0.0
    %v2753 = vand.u32 %v133, 4294901760
    %2754 = vmatpush1.msra.mxu0 %v2753
    %2755 = vmatprep.subr.mxu0 0.0
    %v2756 = vand.u32 %v134, 4294901760
    %2757 = vmatpush1.msra.mxu0 %v2756
    %2758 = vmatprep.subr.mxu0 0.0
    %v2759 = vand.u32 %v135, 4294901760
    %2760 = vmatpush1.msra.mxu0 %v2759
    %2761 = vmatprep.subr.mxu0 0.0
    %v2762 = vand.u32 %v136, 4294901760
    %2763 = vmatpush1.msra.mxu0 %v2762
    %2764 = vmatprep.subr.mxu0 0.0
    %v2765 = vand.u32 %v137, 4294901760
    %2766 = vmatpush1.msra.mxu0 %v2765
    %2767 = vmatprep.subr.mxu0 0.0
    %v2768 = vand.u32 %v138, 4294901760
    %2769 = vmatpush1.msra.mxu0 %v2768
    %v2770 = vand.u32 %v182, 4294901760
    %2771 = vmatprep.mubr.f32.mxu0 %v2770
    %v2772 = vand.u32 %v174, 4294901760
    %2773 = vmatmul.mubr.f32.gmra.mrb[0].mxu0 %v2772
    %v2774 = vpop.f32.mrb[0].mxu0
    %v2775 = vadd.f32 %v2671, %v2774
    %v2776 = vpop.f32.mrb[0].mxu0
    %2777 = vdwg.mxu0
    %2778 = vmatprep.subr.mxu0 0.0
    %v2779 = vand.u32 %v139, 4294901760
    %2780 = vmatpush1.msra.mxu0 %v2779
    %2781 = vmatprep.subr.mxu0 0.0
    %v2782 = vand.u32 %v140, 4294901760
    %2783 = vmatpush1.msra.mxu0 %v2782
    %2784 = vmatprep.subr.mxu0 0.0
    %2785 = vmatpush1.msra.mxu0 0.0
    %2786 = vmatprep.subr.mxu0 0.0
    %2787 = vmatpush1.msra.mxu0 0.0
    %2788 = vmatprep.subr.mxu0 0.0
    %2789 = vmatpush1.msra.mxu0 0.0
    %2790 = vmatprep.subr.mxu0 0.0
    %2791 = vmatpush1.msra.mxu0 0.0
    %2792 = vmatprep.subr.mxu0 0.0
    %2793 = vmatpush1.msra.mxu0 0.0
    %2794 = vmatprep.subr.mxu0 0.0
    %2795 = vmatpush1.msra.mxu0 0.0
    %2796 = vmatprep.subr.mxu0 0.0
    %2797 = vmatpush1.msra.mxu0 0.0
    %2798 = vmatprep.subr.mxu0 0.0
    %2799 = vmatpush1.msra.mxu0 0.0
    %2800 = vmatprep.subr.mxu0 0.0
    %2801 = vmatpush1.msra.mxu0 0.0
    %2802 = vmatprep.subr.mxu0 0.0
    %2803 = vmatpush1.msra.mxu0 0.0
    %2804 = vmatprep.subr.mxu0 0.0
    %2805 = vmatpush1.msra.mxu0 0.0
    %2806 = vmatprep.subr.mxu0 0.0
    %2807 = vmatpush1.msra.mxu0 0.0
    %2808 = vmatprep.subr.mxu0 0.0
    %2809 = vmatpush1.msra.mxu0 0.0
    %2810 = vmatprep.subr.mxu0 0.0
    %2811 = vmatpush1.msra.mxu0 0.0
    %2812 = vmatprep.subr.mxu0 0.0
    %2813 = vmatpush1.msra.mxu0 0.0
    %2814 = vmatprep.subr.mxu0 0.0
    %2815 = vmatpush1.msra.mxu0 0.0
    %2816 = vmatprep.subr.mxu0 0.0
    %2817 = vmatpush1.msra.mxu0 0.0
    %2818 = vmatprep.subr.mxu0 0.0
    %2819 = vmatpush1.msra.mxu0 0.0
    %2820 = vmatprep.subr.mxu0 0.0
    %2821 = vmatpush1.msra.mxu0 0.0
    %2822 = vmatprep.subr.mxu0 0.0
    %2823 = vmatpush1.msra.mxu0 0.0
    %2824 = vmatprep.subr.mxu0 0.0
    %2825 = vmatpush1.msra.mxu0 0.0
    %2826 = vmatprep.subr.mxu0 0.0
    %2827 = vmatpush1.msra.mxu0 0.0
    %2828 = vmatprep.subr.mxu0 0.0
    %2829 = vmatpush1.msra.mxu0 0.0
    %2830 = vmatprep.subr.mxu0 0.0
    %2831 = vmatpush1.msra.mxu0 0.0
    %2832 = vmatprep.subr.mxu0 0.0
    %2833 = vmatpush1.msra.mxu0 0.0
    %2834 = vmatprep.subr.mxu0 0.0
    %2835 = vmatpush1.msra.mxu0 0.0
    %2836 = vmatprep.subr.mxu0 0.0
    %2837 = vmatpush1.msra.mxu0 0.0
    %2838 = vmatprep.subr.mxu0 0.0
    %2839 = vmatpush1.msra.mxu0 0.0
    %2840 = vmatprep.subr.mxu0 0.0
    %2841 = vmatpush1.msra.mxu0 0.0
    %2842 = vmatprep.subr.mxu0 0.0
    %2843 = vmatpush1.msra.mxu0 0.0
    %2844 = vmatprep.mubr.f32.mxu0 0.0
    %v2845 = vand.u32 %v190, 4294901760
    %v2846 = vsub.f32 %v190, %v2845
    %v2847 = vand.u32 %v2846, 4294901760
    %v2848 = vsub.f32 %v2846, %v2847
    %v2849 = vand.u32 %v2848, 4294901760
    %2850 = vmatmul.mubr.f32.gmra.mrb[0].mxu0 %v2849
    %v2851 = vpop.f32.mrb[0].mxu0
    %v2852 = vadd.f32 %v2775, %v2851
    %v2853 = vpop.f32.mrb[0].mxu0
    %2854 = vdwg.mxu0
    %2855 = vmatprep.subr.mxu0 0.0
    %v2856 = vand.u32 %v139, 4294901760
    %v2857 = vsub.f32 %v139, %v2856
    %v2858 = vand.u32 %v2857, 4294901760
    %v2859 = vsub.f32 %v2857, %v2858
    %v2860 = vand.u32 %v2859, 4294901760
    %2861 = vmatpush1.msra.mxu0 %v2860
    %2862 = vmatprep.subr.mxu0 0.0
    %v2863 = vand.u32 %v140, 4294901760
    %v2864 = vsub.f32 %v140, %v2863
    %v2865 = vand.u32 %v2864, 4294901760
    %v2866 = vsub.f32 %v2864, %v2865
    %v2867 = vand.u32 %v2866, 4294901760
    %2868 = vmatpush1.msra.mxu0 %v2867
    %2869 = vmatprep.subr.mxu0 0.0
    %2870 = vmatpush1.msra.mxu0 0.0
    %2871 = vmatprep.subr.mxu0 0.0
    %2872 = vmatpush1.msra.mxu0 0.0
    %2873 = vmatprep.subr.mxu0 0.0
    %2874 = vmatpush1.msra.mxu0 0.0
    %2875 = vmatprep.subr.mxu0 0.0
    %2876 = vmatpush1.msra.mxu0 0.0
    %2877 = vmatprep.subr.mxu0 0.0
    %2878 = vmatpush1.msra.mxu0 0.0
    %2879 = vmatprep.subr.mxu0 0.0
    %2880 = vmatpush1.msra.mxu0 0.0
    %2881 = vmatprep.subr.mxu0 0.0
    %2882 = vmatpush1.msra.mxu0 0.0
    %2883 = vmatprep.subr.mxu0 0.0
    %2884 = vmatpush1.msra.mxu0 0.0
    %2885 = vmatprep.subr.mxu0 0.0
    %2886 = vmatpush1.msra.mxu0 0.0
    %2887 = vmatprep.subr.mxu0 0.0
    %2888 = vmatpush1.msra.mxu0 0.0
    %2889 = vmatprep.subr.mxu0 0.0
    %2890 = vmatpush1.msra.mxu0 0.0
    %2891 = vmatprep.subr.mxu0 0.0
    %2892 = vmatpush1.msra.mxu0 0.0
    %2893 = vmatprep.subr.mxu0 0.0
    %2894 = vmatpush1.msra.mxu0 0.0
    %2895 = vmatprep.subr.mxu0 0.0
    %2896 = vmatpush1.msra.mxu0 0.0
    %2897 = vmatprep.subr.mxu0 0.0
    %2898 = vmatpush1.msra.mxu0 0.0
    %2899 = vmatprep.subr.mxu0 0.0
    %2900 = vmatpush1.msra.mxu0 0.0
    %2901 = vmatprep.subr.mxu0 0.0
    %2902 = vmatpush1.msra.mxu0 0.0
    %2903 = vmatprep.subr.mxu0 0.0
    %2904 = vmatpush1.msra.mxu0 0.0
    %2905 = vmatprep.subr.mxu0 0.0
    %2906 = vmatpush1.msra.mxu0 0.0
    %2907 = vmatprep.subr.mxu0 0.0
    %2908 = vmatpush1.msra.mxu0 0.0
    %2909 = vmatprep.subr.mxu0 0.0
    %2910 = vmatpush1.msra.mxu0 0.0
    %2911 = vmatprep.subr.mxu0 0.0
    %2912 = vmatpush1.msra.mxu0 0.0
    %2913 = vmatprep.subr.mxu0 0.0
    %2914 = vmatpush1.msra.mxu0 0.0
    %2915 = vmatprep.subr.mxu0 0.0
    %2916 = vmatpush1.msra.mxu0 0.0
    %2917 = vmatprep.subr.mxu0 0.0
    %2918 = vmatpush1.msra.mxu0 0.0
    %2919 = vmatprep.subr.mxu0 0.0
    %2920 = vmatpush1.msra.mxu0 0.0
    %2921 = vmatprep.subr.mxu0 0.0
    %2922 = vmatpush1.msra.mxu0 0.0
    %2923 = vmatprep.subr.mxu0 0.0
    %2924 = vmatpush1.msra.mxu0 0.0
    %2925 = vmatprep.subr.mxu0 0.0
    %2926 = vmatpush1.msra.mxu0 0.0
    %2927 = vmatprep.subr.mxu0 0.0
    %2928 = vmatpush1.msra.mxu0 0.0
    %2929 = vmatprep.mubr.f32.mxu0 0.0
    %v2930 = vand.u32 %v190, 4294901760
    %2931 = vmatmul.mubr.f32.gmra.mrb[0].mxu0 %v2930
    %v2932 = vpop.f32.mrb[0].mxu0
    %v2933 = vadd.f32 %v2852, %v2932
    %v2934 = vpop.f32.mrb[0].mxu0
    %2935 = vdwg.mxu0
    %2936 = vmatprep.subr.mxu0 0.0
    %v2937 = vand.u32 %v139, 4294901760
    %v2938 = vsub.f32 %v139, %v2937
    %2939 = vmatpush1.msra.mxu0 %v2938
    %2940 = vmatprep.subr.mxu0 0.0
    %v2941 = vand.u32 %v140, 4294901760
    %v2942 = vsub.f32 %v140, %v2941
    %2943 = vmatpush1.msra.mxu0 %v2942
    %2944 = vmatprep.subr.mxu0 0.0
    %2945 = vmatpush1.msra.mxu0 0.0
    %2946 = vmatprep.subr.mxu0 0.0
    %2947 = vmatpush1.msra.mxu0 0.0
    %2948 = vmatprep.subr.mxu0 0.0
    %2949 = vmatpush1.msra.mxu0 0.0
    %2950 = vmatprep.subr.mxu0 0.0
    %2951 = vmatpush1.msra.mxu0 0.0
    %2952 = vmatprep.subr.mxu0 0.0
    %2953 = vmatpush1.msra.mxu0 0.0
    %2954 = vmatprep.subr.mxu0 0.0
    %2955 = vmatpush1.msra.mxu0 0.0
    %2956 = vmatprep.subr.mxu0 0.0
    %2957 = vmatpush1.msra.mxu0 0.0
    %2958 = vmatprep.subr.mxu0 0.0
    %2959 = vmatpush1.msra.mxu0 0.0
    %2960 = vmatprep.subr.mxu0 0.0
    %2961 = vmatpush1.msra.mxu0 0.0
    %2962 = vmatprep.subr.mxu0 0.0
    %2963 = vmatpush1.msra.mxu0 0.0
    %2964 = vmatprep.subr.mxu0 0.0
    %2965 = vmatpush1.msra.mxu0 0.0
    %2966 = vmatprep.subr.mxu0 0.0
    %2967 = vmatpush1.msra.mxu0 0.0
    %2968 = vmatprep.subr.mxu0 0.0
    %2969 = vmatpush1.msra.mxu0 0.0
    %2970 = vmatprep.subr.mxu0 0.0
    %2971 = vmatpush1.msra.mxu0 0.0
    %2972 = vmatprep.subr.mxu0 0.0
    %2973 = vmatpush1.msra.mxu0 0.0
    %2974 = vmatprep.subr.mxu0 0.0
    %2975 = vmatpush1.msra.mxu0 0.0
    %2976 = vmatprep.subr.mxu0 0.0
    %2977 = vmatpush1.msra.mxu0 0.0
    %2978 = vmatprep.subr.mxu0 0.0
    %2979 = vmatpush1.msra.mxu0 0.0
    %2980 = vmatprep.subr.mxu0 0.0
    %2981 = vmatpush1.msra.mxu0 0.0
    %2982 = vmatprep.subr.mxu0 0.0
    %2983 = vmatpush1.msra.mxu0 0.0
    %2984 = vmatprep.subr.mxu0 0.0
    %2985 = vmatpush1.msra.mxu0 0.0
    %2986 = vmatprep.subr.mxu0 0.0
    %2987 = vmatpush1.msra.mxu0 0.0
    %2988 = vmatprep.subr.mxu0 0.0
    %2989 = vmatpush1.msra.mxu0 0.0
    %2990 = vmatprep.subr.mxu0 0.0
    %2991 = vmatpush1.msra.mxu0 0.0
    %2992 = vmatprep.subr.mxu0 0.0
    %2993 = vmatpush1.msra.mxu0 0.0
    %2994 = vmatprep.subr.mxu0 0.0
    %2995 = vmatpush1.msra.mxu0 0.0
    %2996 = vmatprep.subr.mxu0 0.0
    %2997 = vmatpush1.msra.mxu0 0.0
    %2998 = vmatprep.subr.mxu0 0.0
    %2999 = vmatpush1.msra.mxu0 0.0
    %3000 = vmatprep.subr.mxu0 0.0
    %3001 = vmatpush1.msra.mxu0 0.0
    %3002 = vmatprep.subr.mxu0 0.0
    %3003 = vmatpush1.msra.mxu0 0.0
    %3004 = vmatprep.mubr.f32.mxu0 0.0
    %v3005 = vand.u32 %v190, 4294901760
    %v3006 = vsub.f32 %v190, %v3005
    %3007 = vmatmul.mubr.f32.gmra.mrb[0].mxu0 %v3006
    %v3008 = vpop.f32.mrb[0].mxu0
    %v3009 = vadd.f32 %v2933, %v3008
    %v3010 = vpop.f32.mrb[0].mxu0
    %3011 = vdwg.mxu0
    %3012 = vmatprep.subr.mxu0 0.0
    %v3013 = vand.u32 %v139, 4294901760
    %3014 = vmatpush1.msra.mxu0 %v3013
    %3015 = vmatprep.subr.mxu0 0.0
    %v3016 = vand.u32 %v140, 4294901760
    %3017 = vmatpush1.msra.mxu0 %v3016
    %3018 = vmatprep.subr.mxu0 0.0
    %3019 = vmatpush1.msra.mxu0 0.0
    %3020 = vmatprep.subr.mxu0 0.0
    %3021 = vmatpush1.msra.mxu0 0.0
    %3022 = vmatprep.subr.mxu0 0.0
    %3023 = vmatpush1.msra.mxu0 0.0
    %3024 = vmatprep.subr.mxu0 0.0
    %3025 = vmatpush1.msra.mxu0 0.0
    %3026 = vmatprep.subr.mxu0 0.0
    %3027 = vmatpush1.msra.mxu0 0.0
    %3028 = vmatprep.subr.mxu0 0.0
    %3029 = vmatpush1.msra.mxu0 0.0
    %3030 = vmatprep.subr.mxu0 0.0
    %3031 = vmatpush1.msra.mxu0 0.0
    %3032 = vmatprep.subr.mxu0 0.0
    %3033 = vmatpush1.msra.mxu0 0.0
    %3034 = vmatprep.subr.mxu0 0.0
    %3035 = vmatpush1.msra.mxu0 0.0
    %3036 = vmatprep.subr.mxu0 0.0
    %3037 = vmatpush1.msra.mxu0 0.0
    %3038 = vmatprep.subr.mxu0 0.0
    %3039 = vmatpush1.msra.mxu0 0.0
    %3040 = vmatprep.subr.mxu0 0.0
    %3041 = vmatpush1.msra.mxu0 0.0
    %3042 = vmatprep.subr.mxu0 0.0
    %3043 = vmatpush1.msra.mxu0 0.0
    %3044 = vmatprep.subr.mxu0 0.0
    %3045 = vmatpush1.msra.mxu0 0.0
    %3046 = vmatprep.subr.mxu0 0.0
    %3047 = vmatpush1.msra.mxu0 0.0
    %3048 = vmatprep.subr.mxu0 0.0
    %3049 = vmatpush1.msra.mxu0 0.0
    %3050 = vmatprep.subr.mxu0 0.0
    %3051 = vmatpush1.msra.mxu0 0.0
    %3052 = vmatprep.subr.mxu0 0.0
    %3053 = vmatpush1.msra.mxu0 0.0
    %3054 = vmatprep.subr.mxu0 0.0
    %3055 = vmatpush1.msra.mxu0 0.0
    %3056 = vmatprep.subr.mxu0 0.0
    %3057 = vmatpush1.msra.mxu0 0.0
    %3058 = vmatprep.subr.mxu0 0.0
    %3059 = vmatpush1.msra.mxu0 0.0
    %3060 = vmatprep.subr.mxu0 0.0
    %3061 = vmatpush1.msra.mxu0 0.0
    %3062 = vmatprep.subr.mxu0 0.0
    %3063 = vmatpush1.msra.mxu0 0.0
    %3064 = vmatprep.subr.mxu0 0.0
    %3065 = vmatpush1.msra.mxu0 0.0
    %3066 = vmatprep.subr.mxu0 0.0
    %3067 = vmatpush1.msra.mxu0 0.0
    %3068 = vmatprep.subr.mxu0 0.0
    %3069 = vmatpush1.msra.mxu0 0.0
    %3070 = vmatprep.subr.mxu0 0.0
    %3071 = vmatpush1.msra.mxu0 0.0
    %3072 = vmatprep.subr.mxu0 0.0
    %3073 = vmatpush1.msra.mxu0 0.0
    %3074 = vmatprep.subr.mxu0 0.0
    %3075 = vmatpush1.msra.mxu0 0.0
    %3076 = vmatprep.subr.mxu0 0.0
    %3077 = vmatpush1.msra.mxu0 0.0
    %3078 = vmatprep.mubr.f32.mxu0 0.0
    %v3079 = vand.u32 %v190, 4294901760
    %v3080 = vsub.f32 %v190, %v3079
    %v3081 = vand.u32 %v3080, 4294901760
    %3082 = vmatmul.mubr.f32.gmra.mrb[0].mxu0 %v3081
    %v3083 = vpop.f32.mrb[0].mxu0
    %v3084 = vadd.f32 %v3009, %v3083
    %v3085 = vpop.f32.mrb[0].mxu0
    %3086 = vdwg.mxu0
    %3087 = vmatprep.subr.mxu0 0.0
    %v3088 = vand.u32 %v139, 4294901760
    %v3089 = vsub.f32 %v139, %v3088
    %v3090 = vand.u32 %v3089, 4294901760
    %3091 = vmatpush1.msra.mxu0 %v3090
    %3092 = vmatprep.subr.mxu0 0.0
    %v3093 = vand.u32 %v140, 4294901760
    %v3094 = vsub.f32 %v140, %v3093
    %v3095 = vand.u32 %v3094, 4294901760
    %3096 = vmatpush1.msra.mxu0 %v3095
    %3097 = vmatprep.subr.mxu0 0.0
    %3098 = vmatpush1.msra.mxu0 0.0
    %3099 = vmatprep.subr.mxu0 0.0
    %3100 = vmatpush1.msra.mxu0 0.0
    %3101 = vmatprep.subr.mxu0 0.0
    %3102 = vmatpush1.msra.mxu0 0.0
    %3103 = vmatprep.subr.mxu0 0.0
    %3104 = vmatpush1.msra.mxu0 0.0
    %3105 = vmatprep.subr.mxu0 0.0
    %3106 = vmatpush1.msra.mxu0 0.0
    %3107 = vmatprep.subr.mxu0 0.0
    %3108 = vmatpush1.msra.mxu0 0.0
    %3109 = vmatprep.subr.mxu0 0.0
    %3110 = vmatpush1.msra.mxu0 0.0
    %3111 = vmatprep.subr.mxu0 0.0
    %3112 = vmatpush1.msra.mxu0 0.0
    %3113 = vmatprep.subr.mxu0 0.0
    %3114 = vmatpush1.msra.mxu0 0.0
    %3115 = vmatprep.subr.mxu0 0.0
    %3116 = vmatpush1.msra.mxu0 0.0
    %3117 = vmatprep.subr.mxu0 0.0
    %3118 = vmatpush1.msra.mxu0 0.0
    %3119 = vmatprep.subr.mxu0 0.0
    %3120 = vmatpush1.msra.mxu0 0.0
    %3121 = vmatprep.subr.mxu0 0.0
    %3122 = vmatpush1.msra.mxu0 0.0
    %3123 = vmatprep.subr.mxu0 0.0
    %3124 = vmatpush1.msra.mxu0 0.0
    %3125 = vmatprep.subr.mxu0 0.0
    %3126 = vmatpush1.msra.mxu0 0.0
    %3127 = vmatprep.subr.mxu0 0.0
    %3128 = vmatpush1.msra.mxu0 0.0
    %3129 = vmatprep.subr.mxu0 0.0
    %3130 = vmatpush1.msra.mxu0 0.0
    %3131 = vmatprep.subr.mxu0 0.0
    %3132 = vmatpush1.msra.mxu0 0.0
    %3133 = vmatprep.subr.mxu0 0.0
    %3134 = vmatpush1.msra.mxu0 0.0
    %3135 = vmatprep.subr.mxu0 0.0
    %3136 = vmatpush1.msra.mxu0 0.0
    %3137 = vmatprep.subr.mxu0 0.0
    %3138 = vmatpush1.msra.mxu0 0.0
    %3139 = vmatprep.subr.mxu0 0.0
    %3140 = vmatpush1.msra.mxu0 0.0
    %3141 = vmatprep.subr.mxu0 0.0
    %3142 = vmatpush1.msra.mxu0 0.0
    %3143 = vmatprep.subr.mxu0 0.0
    %3144 = vmatpush1.msra.mxu0 0.0
    %3145 = vmatprep.subr.mxu0 0.0
    %3146 = vmatpush1.msra.mxu0 0.0
    %3147 = vmatprep.subr.mxu0 0.0
    %3148 = vmatpush1.msra.mxu0 0.0
    %3149 = vmatprep.subr.mxu0 0.0
    %3150 = vmatpush1.msra.mxu0 0.0
    %3151 = vmatprep.subr.mxu0 0.0
    %3152 = vmatpush1.msra.mxu0 0.0
    %3153 = vmatprep.subr.mxu0 0.0
    %3154 = vmatpush1.msra.mxu0 0.0
    %3155 = vmatprep.subr.mxu0 0.0
    %3156 = vmatpush1.msra.mxu0 0.0
    %3157 = vmatprep.mubr.f32.mxu0 0.0
    %v3158 = vand.u32 %v190, 4294901760
    %3159 = vmatmul.mubr.f32.gmra.mrb[0].mxu0 %v3158
    %v3160 = vpop.f32.mrb[0].mxu0
    %v3161 = vadd.f32 %v3084, %v3160
    %v3162 = vpop.f32.mrb[0].mxu0
    %3163 = vdwg.mxu0
    %3164 = vmatprep.subr.mxu0 0.0
    %v3165 = vand.u32 %v139, 4294901760
    %3166 = vmatpush1.msra.mxu0 %v3165
    %3167 = vmatprep.subr.mxu0 0.0
    %v3168 = vand.u32 %v140, 4294901760
    %3169 = vmatpush1.msra.mxu0 %v3168
    %3170 = vmatprep.subr.mxu0 0.0
    %3171 = vmatpush1.msra.mxu0 0.0
    %3172 = vmatprep.subr.mxu0 0.0
    %3173 = vmatpush1.msra.mxu0 0.0
    %3174 = vmatprep.subr.mxu0 0.0
    %3175 = vmatpush1.msra.mxu0 0.0
    %3176 = vmatprep.subr.mxu0 0.0
    %3177 = vmatpush1.msra.mxu0 0.0
    %3178 = vmatprep.subr.mxu0 0.0
    %3179 = vmatpush1.msra.mxu0 0.0
    %3180 = vmatprep.subr.mxu0 0.0
    %3181 = vmatpush1.msra.mxu0 0.0
    %3182 = vmatprep.subr.mxu0 0.0
    %3183 = vmatpush1.msra.mxu0 0.0
    %3184 = vmatprep.subr.mxu0 0.0
    %3185 = vmatpush1.msra.mxu0 0.0
    %3186 = vmatprep.subr.mxu0 0.0
    %3187 = vmatpush1.msra.mxu0 0.0
    %3188 = vmatprep.subr.mxu0 0.0
    %3189 = vmatpush1.msra.mxu0 0.0
    %3190 = vmatprep.subr.mxu0 0.0
    %3191 = vmatpush1.msra.mxu0 0.0
    %3192 = vmatprep.subr.mxu0 0.0
    %3193 = vmatpush1.msra.mxu0 0.0
    %3194 = vmatprep.subr.mxu0 0.0
    %3195 = vmatpush1.msra.mxu0 0.0
    %3196 = vmatprep.subr.mxu0 0.0
    %3197 = vmatpush1.msra.mxu0 0.0
    %3198 = vmatprep.subr.mxu0 0.0
    %3199 = vmatpush1.msra.mxu0 0.0
    %3200 = vmatprep.subr.mxu0 0.0
    %3201 = vmatpush1.msra.mxu0 0.0
    %3202 = vmatprep.subr.mxu0 0.0
    %3203 = vmatpush1.msra.mxu0 0.0
    %3204 = vmatprep.subr.mxu0 0.0
    %3205 = vmatpush1.msra.mxu0 0.0
    %3206 = vmatprep.subr.mxu0 0.0
    %3207 = vmatpush1.msra.mxu0 0.0
    %3208 = vmatprep.subr.mxu0 0.0
    %3209 = vmatpush1.msra.mxu0 0.0
    %3210 = vmatprep.subr.mxu0 0.0
    %3211 = vmatpush1.msra.mxu0 0.0
    %3212 = vmatprep.subr.mxu0 0.0
    %3213 = vmatpush1.msra.mxu0 0.0
    %3214 = vmatprep.subr.mxu0 0.0
    %3215 = vmatpush1.msra.mxu0 0.0
    %3216 = vmatprep.subr.mxu0 0.0
    %3217 = vmatpush1.msra.mxu0 0.0
    %3218 = vmatprep.subr.mxu0 0.0
    %3219 = vmatpush1.msra.mxu0 0.0
    %3220 = vmatprep.subr.mxu0 0.0
    %3221 = vmatpush1.msra.mxu0 0.0
    %3222 = vmatprep.subr.mxu0 0.0
    %3223 = vmatpush1.msra.mxu0 0.0
    %3224 = vmatprep.subr.mxu0 0.0
    %3225 = vmatpush1.msra.mxu0 0.0
    %3226 = vmatprep.subr.mxu0 0.0
    %3227 = vmatpush1.msra.mxu0 0.0
    %3228 = vmatprep.subr.mxu0 0.0
    %3229 = vmatpush1.msra.mxu0 0.0
    %3230 = vmatprep.mubr.f32.mxu0 0.0
    %v3231 = vand.u32 %v190, 4294901760
    %3232 = vmatmul.mubr.f32.gmra.mrb[0].mxu0 %v3231
    %v3233 = vpop.f32.mrb[0].mxu0
    %v3234 = vadd.f32 %v3161, %v3233
    %v3235 = vpop.f32.mrb[0].mxu0
    %3236 = vdwg.mxu0
    %vm3237 = vcmask 1041408
    %v3238 = vsel %vm3237, %v3234, -inf
    %3239 = vmax.xlane.f32.xlu0 %v3238
    %v3240 = vpop.xlane.xlu0 %3239
    %v3241 = vsub.f32 %v3234, %v3240
    %v3242 = vmul.f32 %v3241, 1.442695
    %v3243 = vpow.pop %v3242
    %v3244 = vsel %vm3237, %v3243, 0.0
    %3245 = vadd.xlane.f32.xlu0 %v3244
    %v3246 = vpop.xlane.xlu0 %3245
    %v3247 = vrcp.pop %v3246
    %v3248 = vmul.f32 %v3243, %v3247
    %vm3249 = vcmask 74752
    %3250 = vst.msk [vmem:[#allocation7] sm:$0x3] %vm3249, %v3248
    // Predicated region
    $region22: #{tpu_custom_call.1} parent=1 // pred_check
      _
    $region23: #{tpu_custom_call.1} parent=1 // pred_check_branch
      %3252 = sbr.rel (0) target = $region25
    $region24: #{tpu_custom_call.1} parent=1 // pred_region
      %s3254 = ssub.s32 32, 32
      %3255 = vsyncadd [#allocation4], %s3254
      %s3257 = sshll.u32 [#allocation7], 4
      %s3258 = int_to_ptr.vmem [resolvable:$true] %s3257
      %3260 = dma.vmem_to_hbm [thread:$0]  %s3258, 32, %s3, [#allocation4]
    $region25: #{tpu_custom_call.1} parent=1 // pred_fallthru
      _
    // Predicated region
    $region26: #{tpu_custom_call.1} parent=1 // pred_check
      _
    $region27: #{tpu_custom_call.1} parent=1 // pred_check_branch
      %3262 = sbr.rel (0) target = $region29
    $region28: #{tpu_custom_call.1} parent=1 // pred_region
      %3263 = dma.done [#allocation4], 32
    $region29: #{tpu_custom_call.1} parent=1 // pred_fallthru
      _
    %3264 = vsyncpa [#allocation3], 1
    %3265 = vsyncpa [#allocation6], 1
    %3266 = vsyncpa [#allocation4], 1

</llo_original>
